<compile_context>
chip_gen: v7x
topology: tpu7x:2x2x1
jax: 0.10.0
libtpu: 0.0.40
codegen_flags: <defaults>
</compile_context>

<pallas_src>
import jax
import jax.numpy as jnp
from jax.experimental import pallas as pl
from jax.experimental.pallas import tpu as pltpu


def resnet_block_kernel(x_ref, w1_ref, b1_ref, w2_ref, b2_ref, o_ref):
    """Fused per-row-tile:  out = (GELU(x @ W1 + b1) @ W2 + b2) + x."""
    x = x_ref[...]  # keep native dtype: bf16 inputs hit the full-rate MXU path

    # First linear (MXU, f32 accumulation) + bias + tanh-approx GELU (VPU/EUP, f32).
    h = jnp.dot(x, w1_ref[...], preferred_element_type=jnp.float32)
    h = h + b1_ref[...].astype(jnp.float32)           # b1 is (1, H) -> broadcast over rows
    h = jax.nn.gelu(h, approximate=True)

    # Second linear: cast activations back to the weight dtype so bf16 weights stay full rate.
    y = jnp.dot(h.astype(w2_ref.dtype), w2_ref[...], preferred_element_type=jnp.float32)
    y = y + b2_ref[...].astype(jnp.float32)

    # Residual add (the ResNet wrapper itself), f32 accumulate, cast to output dtype.
    o_ref[...] = (y + x.astype(jnp.float32)).astype(o_ref.dtype)


def _round_up(v, m):
    return ((v + m - 1) // m) * m


def _pad2d(a, rows, cols):
    pr, pc = rows - a.shape[0], cols - a.shape[1]
    if pr or pc:
        a = jnp.pad(a, ((0, pr), (0, pc)))
    return a


def _resident_spec(block_shape, single_buffer):
    """BlockSpec for a grid-invariant (VMEM-resident) operand."""
    index_map = lambda i: (0,) * len(block_shape)
    if single_buffer and hasattr(pl, "Buffered"):
        # Constant block index -> no re-fetch needed; single buffer saves VMEM.
        return pl.BlockSpec(block_shape, index_map, pipeline_mode=pl.Buffered(1))
    return pl.BlockSpec(block_shape, index_map)


def resnet_forward(x, w1, b1, w2, b2, *, block_rows=256):
    """Pallas wrapper.  x: [N, H]; w1,w2: [H, H] (stored as x @ W); b1,b2: [H]."""
    n, h = x.shape
    assert w1.shape == (h, h) and w2.shape == (h, h)
    assert b1.shape == (h,) and b2.shape == (h,)

    # Lane-dense H (multiple of 128) and sublane-friendly row tile (multiple of 16,
    # valid for both f32 and bf16).  Zero padding leaves the math unchanged.
    hp = _round_up(h, 128)
    tn = min(_round_up(block_rows, 16), _round_up(n, 16))
    n_pad = _round_up(n, tn)

    xp = _pad2d(x, n_pad, hp)
    w1p = _pad2d(w1, hp, hp)
    w2p = _pad2d(w2, hp, hp)
    b1p = _pad2d(b1.reshape(1, h), 1, hp)
    b2p = _pad2d(b2.reshape(1, h), 1, hp)

    itemsize = jnp.dtype(x.dtype).itemsize
    cost = pl.CostEstimate(
        flops=int(4 * n_pad * hp * hp),                 # two matmuls, 2 flops/MAC
        transcendentals=int(n_pad * hp),                # one tanh per activation
        bytes_accessed=int((2 * n_pad * hp + 2 * hp * hp + 2 * hp) * itemsize),
    )

    # VMEM budget: resident weights (single-buffered) + pipelined x/out tiles + f32 temps.
    resident_bytes = (2 * hp * hp + 2 * hp) * itemsize
    tile_bytes = 2 * 2 * tn * hp * itemsize             # x + out, double-buffered
    temp_bytes = 2 * tn * hp * 4                        # f32 h / y intermediates
    vmem_limit = int(min(max(2 * (resident_bytes + tile_bytes + temp_bytes), 32 << 20), 64 << 20))

    def run(single_buffer_weights):
        grid_spec = pltpu.PrefetchScalarGridSpec(
            num_scalar_prefetch=0,
            grid=(n_pad // tn,),
            in_specs=[
                pl.BlockSpec((tn, hp), lambda i: (i, 0)),                 # x row tile
                _resident_spec((hp, hp), single_buffer_weights),          # W1
                _resident_spec((1, hp), single_buffer_weights),           # b1
                _resident_spec((hp, hp), single_buffer_weights),          # W2
                _resident_spec((1, hp), single_buffer_weights),           # b2
            ],
            out_specs=pl.BlockSpec((tn, hp), lambda i: (i, 0)),
        )
        return pl.pallas_call(
            resnet_block_kernel,
            out_shape=jax.ShapeDtypeStruct((n_pad, hp), x.dtype),
            grid_spec=grid_spec,
            compiler_params=pltpu.CompilerParams(
                dimension_semantics=("parallel",),       # rows independent -> megacore on v7x
                vmem_limit_bytes=vmem_limit,
            ),
            cost_estimate=cost,
        )(xp, w1p, b1p, w2p, b2p)

    try:
        out = run(True)
    except Exception:
        # Fallback for jax versions where BlockSpec(pipeline_mode=pl.Buffered(1)) is not
        # supported by the Mosaic pallas_call path; default double-buffering is still correct.
        out = run(False)

    if (n_pad, hp) != (n, h):
        out = out[:n, :h]
    return out


def resnet_reference(x, w1, b1, w2, b2):
    """Pure-JAX reference of module(x) + x (same tanh-approx GELU, f32 math)."""
    xf = x.astype(jnp.float32)
    h = jax.nn.gelu(xf @ w1.astype(jnp.float32) + b1.astype(jnp.float32), approximate=True)
    y = h @ w2.astype(jnp.float32) + b2.astype(jnp.float32)
    return y + xf


if __name__ == "__main__":
    key = jax.random.PRNGKey(0)

    def make_inputs(n, h, dtype):
        kx, k1, k2, k3, k4 = jax.random.split(jax.random.fold_in(key, n * 1000 + h), 5)
        x = jax.random.normal(kx, (n, h), dtype=jnp.float32)
        w1 = jax.random.normal(k1, (h, h), dtype=jnp.float32) * 0.1
        b1 = jax.random.normal(k2, (h,), dtype=jnp.float32) * 0.1
        w2 = jax.random.normal(k3, (h, h), dtype=jnp.float32) * 0.1
        b2 = jax.random.normal(k4, (h,), dtype=jnp.float32) * 0.1
        return [a.astype(dtype) for a in (x, w1, b1, w2, b2)]

    # Case 1: lane/MXU-friendly f32 shapes, multi-step pipelined grid (2 row tiles).
    args = make_inputs(256, 128, jnp.float32)
    out = jax.block_until_ready(resnet_forward(*args, block_rows=128))
    ref = resnet_reference(*args)
    assert out.shape == (256, 128)
    assert jnp.allclose(out, ref, atol=1e-3, rtol=1e-3), "f32 mismatch vs reference"

    # Case 2: bf16 inputs/weights -> full-rate MXU matmuls with f32 accumulation.
    args = make_inputs(256, 128, jnp.bfloat16)
    out = jax.block_until_ready(resnet_forward(*args, block_rows=256))
    ref = resnet_reference(*args)
    assert out.dtype == jnp.bfloat16
    assert jnp.allclose(out.astype(jnp.float32), ref, atol=5e-2, rtol=5e-2), \
        "bf16 mismatch vs reference"

    # Case 3: unaligned small shapes exercising the padding path (H 96->128, N 50->64).
    args = make_inputs(50, 96, jnp.float32)
    out = jax.block_until_ready(resnet_forward(*args))
    ref = resnet_reference(*args)
    assert out.shape == (50, 96)
    assert jnp.allclose(out, ref, atol=1e-3, rtol=1e-3), "padded-shape mismatch vs reference"

    print("KERNEL_OK")
</pallas_src>

<mosaic_0001>
module attributes {stable_mosaic.version = 11 : i64} {
  func.func @resnet_block_kernel(%arg0: i32, %arg1: memref<128x128xf32, #tpu.memory_space<vmem>>, %arg2: memref<128x128xf32, #tpu.memory_space<vmem>>, %arg3: memref<1x128xf32, #tpu.memory_space<vmem>>, %arg4: memref<128x128xf32, #tpu.memory_space<vmem>>, %arg5: memref<1x128xf32, #tpu.memory_space<vmem>>, %arg6: memref<128x128xf32, #tpu.memory_space<vmem>>) attributes {dimension_semantics = [#tpu.dimension_semantics<parallel>], iteration_bounds = array<i64: 2>, scalar_prefetch = 0 : i64, scratch_operands = 0 : i64, tpu.core_type = #tpu.core_type<tc>, window_params = [{transform_indices = @transform_0, window_bounds = array<i64: 128, 128>}, {pipeline_mode = #tpu.pipeline_mode<synchronous>, transform_indices = @transform_1, window_bounds = array<i64: 128, 128>}, {pipeline_mode = #tpu.pipeline_mode<synchronous>, transform_indices = @transform_2, window_bounds = array<i64: 1, 128>}, {pipeline_mode = #tpu.pipeline_mode<synchronous>, transform_indices = @transform_3, window_bounds = array<i64: 128, 128>}, {pipeline_mode = #tpu.pipeline_mode<synchronous>, transform_indices = @transform_4, window_bounds = array<i64: 1, 128>}, {transform_indices = @transform_5, window_bounds = array<i64: 128, 128>}]} {
    %c0 = arith.constant 0 : index
    %c0_0 = arith.constant 0 : index
    %0 = vector.load %arg1[%c0, %c0_0] : memref<128x128xf32, #tpu.memory_space<vmem>>, vector<128x128xf32>
    %c0_1 = arith.constant 0 : index
    %c0_2 = arith.constant 0 : index
    %1 = vector.load %arg2[%c0_1, %c0_2] : memref<128x128xf32, #tpu.memory_space<vmem>>, vector<128x128xf32>
    %cst = arith.constant dense<0.000000e+00> : vector<128x128xf32>
    %2 = tpu.matmul %0, %1, %cst {dimension_numbers = #tpu.dot_dimension_numbers<[1], [0], [0], [1], [0, 0, 1, 1], [], []>} : vector<128x128xf32>, vector<128x128xf32>, vector<128x128xf32> -> vector<128x128xf32>
    %c0_3 = arith.constant 0 : index
    %c0_4 = arith.constant 0 : index
    %3 = vector.load %arg3[%c0_3, %c0_4] : memref<1x128xf32, #tpu.memory_space<vmem>>, vector<1x128xf32>
    %4 = vector.broadcast %3 : vector<1x128xf32> to vector<128x128xf32>
    %5 = arith.addf %2, %4 : vector<128x128xf32>
    %6 = arith.mulf %5, %5 : vector<128x128xf32>
    %7 = arith.mulf %5, %6 : vector<128x128xf32>
    %cst_5 = arith.constant 4.471500e-02 : f32
    %8 = vector.broadcast %cst_5 : f32 to vector<128x128xf32>
    %9 = arith.mulf %8, %7 : vector<128x128xf32>
    %10 = arith.addf %5, %9 : vector<128x128xf32>
    %cst_6 = arith.constant 0.797884583 : f32
    %11 = vector.broadcast %cst_6 : f32 to vector<128x128xf32>
    %12 = arith.mulf %11, %10 : vector<128x128xf32>
    %13 = math.tanh %12 : vector<128x128xf32>
    %cst_7 = arith.constant 1.000000e+00 : f32
    %14 = vector.broadcast %cst_7 : f32 to vector<128x128xf32>
    %15 = arith.addf %14, %13 : vector<128x128xf32>
    %cst_8 = arith.constant 5.000000e-01 : f32
    %16 = vector.broadcast %cst_8 : f32 to vector<128x128xf32>
    %17 = arith.mulf %16, %15 : vector<128x128xf32>
    %18 = arith.mulf %5, %17 : vector<128x128xf32>
    %c0_9 = arith.constant 0 : index
    %c0_10 = arith.constant 0 : index
    %19 = vector.load %arg4[%c0_9, %c0_10] : memref<128x128xf32, #tpu.memory_space<vmem>>, vector<128x128xf32>
    %cst_11 = arith.constant dense<0.000000e+00> : vector<128x128xf32>
    %20 = tpu.matmul %18, %19, %cst_11 {dimension_numbers = #tpu.dot_dimension_numbers<[1], [0], [0], [1], [0, 0, 1, 1], [], []>} : vector<128x128xf32>, vector<128x128xf32>, vector<128x128xf32> -> vector<128x128xf32>
    %c0_12 = arith.constant 0 : index
    %c0_13 = arith.constant 0 : index
    %21 = vector.load %arg5[%c0_12, %c0_13] : memref<1x128xf32, #tpu.memory_space<vmem>>, vector<1x128xf32>
    %22 = vector.broadcast %21 : vector<1x128xf32> to vector<128x128xf32>
    %23 = arith.addf %20, %22 : vector<128x128xf32>
    %24 = arith.addf %23, %0 : vector<128x128xf32>
    %c0_14 = arith.constant 0 : index
    %c0_15 = arith.constant 0 : index
    %25 = vector.load %arg6[%c0_14, %c0_15] : memref<128x128xf32, #tpu.memory_space<vmem>>, vector<128x128xf32>
    tpu.vector_store %arg6[%c0_14, %c0_15], %24 {strides = array<i32>} : memref<128x128xf32, #tpu.memory_space<vmem>>, vector<128x128xf32>,
    return
  }
  func.func @transform_0(%arg0: i32) -> (i32, i32) {
    %c0_i32 = arith.constant 0 : i32
    %c0_i32_0 = arith.constant 0 : i32
    return %arg0, %c0_i32 : i32, i32
  }
  func.func @transform_1(%arg0: i32) -> (i32, i32) {
    %c0_i32 = arith.constant 0 : i32
    %c0_i32_0 = arith.constant 0 : i32
    %c0_i32_1 = arith.constant 0 : i32
    return %c0_i32, %c0_i32_0 : i32, i32
  }
  func.func @transform_2(%arg0: i32) -> (i32, i32) {
    %c0_i32 = arith.constant 0 : i32
    %c0_i32_0 = arith.constant 0 : i32
    %c0_i32_1 = arith.constant 0 : i32
    return %c0_i32, %c0_i32_0 : i32, i32
  }
  func.func @transform_3(%arg0: i32) -> (i32, i32) {
    %c0_i32 = arith.constant 0 : i32
    %c0_i32_0 = arith.constant 0 : i32
    %c0_i32_1 = arith.constant 0 : i32
    return %c0_i32, %c0_i32_0 : i32, i32
  }
  func.func @transform_4(%arg0: i32) -> (i32, i32) {
    %c0_i32 = arith.constant 0 : i32
    %c0_i32_0 = arith.constant 0 : i32
    %c0_i32_1 = arith.constant 0 : i32
    return %c0_i32, %c0_i32_0 : i32, i32
  }
  func.func @transform_5(%arg0: i32) -> (i32, i32) {
    %c0_i32 = arith.constant 0 : i32
    %c0_i32_0 = arith.constant 0 : i32
    return %arg0, %c0_i32 : i32, i32
  }
}

module attributes {stable_mosaic.version = 11 : i64} {
  func.func @resnet_block_kernel(%arg0: i32, %arg1: memref<128x128xf32, #tpu.memory_space<vmem>>, %arg2: memref<128x128xf32, #tpu.memory_space<vmem>>, %arg3: memref<1x128xf32, #tpu.memory_space<vmem>>, %arg4: memref<128x128xf32, #tpu.memory_space<vmem>>, %arg5: memref<1x128xf32, #tpu.memory_space<vmem>>, %arg6: memref<128x128xf32, #tpu.memory_space<vmem>>) attributes {dimension_semantics = [#tpu.dimension_semantics<parallel>], iteration_bounds = array<i64: 2>, scalar_prefetch = 0 : i64, scratch_operands = 0 : i64, tpu.core_type = #tpu.core_type<tc>, window_params = [{transform_indices = @transform_0, window_bounds = array<i64: 128, 128>}, {pipeline_mode = #tpu.pipeline_mode<synchronous>, transform_indices = @transform_1, window_bounds = array<i64: 128, 128>}, {pipeline_mode = #tpu.pipeline_mode<synchronous>, transform_indices = @transform_2, window_bounds = array<i64: 1, 128>}, {pipeline_mode = #tpu.pipeline_mode<synchronous>, transform_indices = @transform_3, window_bounds = array<i64: 128, 128>}, {pipeline_mode = #tpu.pipeline_mode<synchronous>, transform_indices = @transform_4, window_bounds = array<i64: 1, 128>}, {transform_indices = @transform_5, window_bounds = array<i64: 128, 128>}]} {
    %c0 = arith.constant 0 : index
    %c0_0 = arith.constant 0 : index
    %0 = vector.load %arg1[%c0, %c0_0] : memref<128x128xf32, #tpu.memory_space<vmem>>, vector<128x128xf32>
    %c0_1 = arith.constant 0 : index
    %c0_2 = arith.constant 0 : index
    %1 = vector.load %arg2[%c0_1, %c0_2] : memref<128x128xf32, #tpu.memory_space<vmem>>, vector<128x128xf32>
    %cst = arith.constant dense<0.000000e+00> : vector<128x128xf32>
    %2 = tpu.matmul %0, %1, %cst {dimension_numbers = #tpu.dot_dimension_numbers<[1], [0], [0], [1], [0, 0, 1, 1], [], []>} : vector<128x128xf32>, vector<128x128xf32>, vector<128x128xf32> -> vector<128x128xf32>
    %c0_3 = arith.constant 0 : index
    %c0_4 = arith.constant 0 : index
    %3 = vector.load %arg3[%c0_3, %c0_4] : memref<1x128xf32, #tpu.memory_space<vmem>>, vector<1x128xf32>
    %4 = vector.broadcast %3 : vector<1x128xf32> to vector<128x128xf32>
    %5 = arith.addf %2, %4 : vector<128x128xf32>
    %6 = arith.mulf %5, %5 : vector<128x128xf32>
    %7 = arith.mulf %5, %6 : vector<128x128xf32>
    %cst_5 = arith.constant 4.471500e-02 : f32
    %8 = vector.broadcast %cst_5 : f32 to vector<128x128xf32>
    %9 = arith.mulf %8, %7 : vector<128x128xf32>
    %10 = arith.addf %5, %9 : vector<128x128xf32>
    %cst_6 = arith.constant 0.797884583 : f32
    %11 = vector.broadcast %cst_6 : f32 to vector<128x128xf32>
    %12 = arith.mulf %11, %10 : vector<128x128xf32>
    %13 = math.tanh %12 : vector<128x128xf32>
    %cst_7 = arith.constant 1.000000e+00 : f32
    %14 = vector.broadcast %cst_7 : f32 to vector<128x128xf32>
    %15 = arith.addf %14, %13 : vector<128x128xf32>
    %cst_8 = arith.constant 5.000000e-01 : f32
    %16 = vector.broadcast %cst_8 : f32 to vector<128x128xf32>
    %17 = arith.mulf %16, %15 : vector<128x128xf32>
    %18 = arith.mulf %5, %17 : vector<128x128xf32>
    %c0_9 = arith.constant 0 : index
    %c0_10 = arith.constant 0 : index
    %19 = vector.load %arg4[%c0_9, %c0_10] : memref<128x128xf32, #tpu.memory_space<vmem>>, vector<128x128xf32>
    %cst_11 = arith.constant dense<0.000000e+00> : vector<128x128xf32>
    %20 = tpu.matmul %18, %19, %cst_11 {dimension_numbers = #tpu.dot_dimension_numbers<[1], [0], [0], [1], [0, 0, 1, 1], [], []>} : vector<128x128xf32>, vector<128x128xf32>, vector<128x128xf32> -> vector<128x128xf32>
    %c0_12 = arith.constant 0 : index
    %c0_13 = arith.constant 0 : index
    %21 = vector.load %arg5[%c0_12, %c0_13] : memref<1x128xf32, #tpu.memory_space<vmem>>, vector<1x128xf32>
    %22 = vector.broadcast %21 : vector<1x128xf32> to vector<128x128xf32>
    %23 = arith.addf %20, %22 : vector<128x128xf32>
    %24 = arith.addf %23, %0 : vector<128x128xf32>
    %c0_14 = arith.constant 0 : index
    %c0_15 = arith.constant 0 : index
    %25 = vector.load %arg6[%c0_14, %c0_15] : memref<128x128xf32, #tpu.memory_space<vmem>>, vector<128x128xf32>
    tpu.vector_store %arg6[%c0_14, %c0_15], %24 {strides = array<i32>} : memref<128x128xf32, #tpu.memory_space<vmem>>, vector<128x128xf32>,
    return
  }
  func.func @transform_0(%arg0: i32) -> (i32, i32) {
    %c0_i32 = arith.constant 0 : i32
    %c0_i32_0 = arith.constant 0 : i32
    return %arg0, %c0_i32 : i32, i32
  }
  func.func @transform_1(%arg0: i32) -> (i32, i32) {
    %c0_i32 = arith.constant 0 : i32
    %c0_i32_0 = arith.constant 0 : i32
    %c0_i32_1 = arith.constant 0 : i32
    return %c0_i32, %c0_i32_0 : i32, i32
  }
  func.func @transform_2(%arg0: i32) -> (i32, i32) {
    %c0_i32 = arith.constant 0 : i32
    %c0_i32_0 = arith.constant 0 : i32
    %c0_i32_1 = arith.constant 0 : i32
    return %c0_i32, %c0_i32_0 : i32, i32
  }
  func.func @transform_3(%arg0: i32) -> (i32, i32) {
    %c0_i32 = arith.constant 0 : i32
    %c0_i32_0 = arith.constant 0 : i32
    %c0_i32_1 = arith.constant 0 : i32
    return %c0_i32, %c0_i32_0 : i32, i32
  }
  func.func @transform_4(%arg0: i32) -> (i32, i32) {
    %c0_i32 = arith.constant 0 : i32
    %c0_i32_0 = arith.constant 0 : i32
    %c0_i32_1 = arith.constant 0 : i32
    return %c0_i32, %c0_i32_0 : i32, i32
  }
  func.func @transform_5(%arg0: i32) -> (i32, i32) {
    %c0_i32 = arith.constant 0 : i32
    %c0_i32_0 = arith.constant 0 : i32
    return %arg0, %c0_i32 : i32, i32
  }
}

</mosaic_0001>

<llo_original>
// kernel: tpu_custom_call.1
$region0: #{tpu_custom_call.1}
  #allocation0 [shape = 'u32[]', space=smem, size = 0x4, offset = 0x4, fixed_abs, tag = 'smem constant byte address 0x4 - core index']
  #allocation1 [shape = 'u32[144,128]{1,0:T(1,128)}', space=vmem, size = 0x12000, scoped, tag = 'internal scratch']
  %s0 = inlined_call_operand.hbm [shape: f32[256,128], index: 0, kind: input, shape index: {}]
  %s1 = inlined_call_operand.hbm [shape: f32[128,128], index: 1, kind: input, shape index: {}]
  %s2 = inlined_call_operand.vmem [shape: f32[1,128], index: 2, kind: input, shape index: {}]
  %s3 = inlined_call_operand.hbm [shape: f32[128,128], index: 3, kind: input, shape index: {}]
  %s4 = inlined_call_operand.vmem [shape: f32[1,128], index: 4, kind: input, shape index: {}]
  %s5 = inlined_call_operand.hbm [shape: f32[256,128], index: 5, kind: output, shape index: {}]
  %s6 = sld [smem:[#allocation0]]
  $region65: #{tpu_custom_call.1} parent=0
    _
  %s8 = ssub.s32 1, %s6
  %s9 = scalar_select 0, %s8, %s6
  $region1: #{tpu_custom_call.1} parent=0
    #allocation2 [shape = 'u8[131072]{0}', space=vmem, size = 0x20000, scoped, tag = 'input window, operand 0']
    #allocation3 [shape = 's32[2]{0}', space=sflag, size = 0x8, scoped, tag = 'scoped memory for tpu_custom_call.1']
    #allocation4 [shape = 's32[2]{0}', space=sflag, size = 0x8, scoped, tag = 'scoped memory for tpu_custom_call.1']
    #allocation5 [shape = 'u8[65536]{0}', space=vmem, size = 0x10000, scoped, tag = 'input window, operand 1, single buffered']
    #allocation6 [shape = 's32[1]{0}', space=sflag, size = 0x4, scoped, tag = 'scoped memory for tpu_custom_call.1']
    #allocation7 [shape = 'u8[65536]{0}', space=vmem, size = 0x10000, scoped, tag = 'input window, operand 3, single buffered']
    #allocation8 [shape = 'u8[131072]{0}', space=vmem, size = 0x20000, scoped, tag = 'output window, operand 0']
    %10 = vsyncpa [#allocation3], 0
    %s11 = scalar_lea.sflag [#allocation3], 1
    %12 = vsyncpa %s11, 0
    %13 = vsyncpa [#allocation6], 0
    %14 = vsyncpa [#allocation4], 0
    %s15 = scalar_lea.sflag [#allocation4], 1
    %16 = vsyncpa %s15, 0
    loop: start=0, step=1, limit=4
    $region2: #{tpu_custom_call.1} parent=1 // loop_pre_header
      _
    $region3: #{tpu_custom_call.1} parent=1 // loop_header
      %s18 = sphi 0, %s22
      %p19 = scmp.ge.s32.totalorder %s18, 4
      %s28 = sphi 0, %s30
      %s31 = sphi 0, %s28
      %s32 = sphi 0, %s31
      %s48 = sphi 0, %s32
      %s52 = sphi 0, %s52
      %s54 = sphi 0, %s52
      %s55 = sphi 0, %s54
      %s69 = sphi 0, %s55
      %s73 = sphi 0, %s73
      %s75 = sphi 0, %s73
      %s76 = sphi 0, %s75
      %s90 = sphi 0, %s76
      %s94 = sphi 0, %s94
      %s96 = sphi 0, %s94
      %s97 = sphi 0, %s96
      %s111 = sphi 0, %s97
      %s115 = sphi 0, %s115
      %s117 = sphi 0, %s115
      %s118 = sphi 0, %s117
      %s132 = sphi 0, %s118
      %s138 = sphi 0, %s140
      %s141 = sphi 0, %s138
      %s142 = sphi 0, %s141
      %s158 = sphi 0, %s142
    $region4: #{tpu_custom_call.1} parent=1 // loop_header_branch
      %21 = sbr.rel (%p19) target = $region8
    $region5: #{tpu_custom_call.1} parent=1 // loop_body
      %s23 = ssub.s32 %s18, 1
      %s24 = ssub.s32 %s18, 2
      %s25 = sadd.s32 %s18, 1
      %s26 = ssub.s32 %s18, %s25
      %p27 = scmp.eq.s32.totalorder %s26, 0
      %s29 = sadd.s32 %s28, 1
      %s30 = scalar_select %p27, %s28, %s29
      %p33 = pneg %p27
      %p34 = scmp.eq.s32.totalorder %s18, 1
      %p35 = por %p33, %p34
      %p36 = scmp.ne.s32.totalorder %s28, %s31
      %p37 = scmp.eq.s32.totalorder %s18, 0
      %p38 = por %p36, %p37
      %p39 = scmp.ne.s32.totalorder %s28, %s31
      %p40 = scmp.eq.s32.totalorder %s23, 1
      %p41 = por %p39, %p40
      %p42 = scmp.ne.s32.totalorder %s31, %s32
      %p43 = scmp.eq.s32.totalorder %s23, 0
      %p44 = por %p42, %p43
      %p45 = scmp.ne.s32.totalorder %s31, %s32
      %p46 = scmp.eq.s32.totalorder %s24, 1
      %p47 = por %p45, %p46
      %p49 = scmp.ne.s32.totalorder %s32, %s48
      %p50 = scmp.eq.s32.totalorder %s24, 0
      %p51 = por %p49, %p50
      %s53 = sadd.s32 %s52, 1
      %p56 = scmp.eq.s32.totalorder %s18, 1
      %p57 = scmp.ne.s32.totalorder %s52, %s54
      %p58 = scmp.eq.s32.totalorder %s18, 0
      %p59 = por %p57, %p58
      %p60 = scmp.ne.s32.totalorder %s52, %s54
      %p61 = scmp.eq.s32.totalorder %s23, 1
      %p62 = por %p60, %p61
      %p63 = scmp.ne.s32.totalorder %s54, %s55
      %p64 = scmp.eq.s32.totalorder %s23, 0
      %p65 = por %p63, %p64
      %p66 = scmp.ne.s32.totalorder %s54, %s55
      %p67 = scmp.eq.s32.totalorder %s24, 1
      %p68 = por %p66, %p67
      %p70 = scmp.ne.s32.totalorder %s55, %s69
      %p71 = scmp.eq.s32.totalorder %s24, 0
      %p72 = por %p70, %p71
      %s74 = sadd.s32 %s73, 1
      %p77 = scmp.eq.s32.totalorder %s18, 1
      %p78 = scmp.ne.s32.totalorder %s73, %s75
      %p79 = scmp.eq.s32.totalorder %s18, 0
      %p80 = por %p78, %p79
      %p81 = scmp.ne.s32.totalorder %s73, %s75
      %p82 = scmp.eq.s32.totalorder %s23, 1
      %p83 = por %p81, %p82
      %p84 = scmp.ne.s32.totalorder %s75, %s76
      %p85 = scmp.eq.s32.totalorder %s23, 0
      %p86 = por %p84, %p85
      %p87 = scmp.ne.s32.totalorder %s75, %s76
      %p88 = scmp.eq.s32.totalorder %s24, 1
      %p89 = por %p87, %p88
      %p91 = scmp.ne.s32.totalorder %s76, %s90
      %p92 = scmp.eq.s32.totalorder %s24, 0
      %p93 = por %p91, %p92
      %s95 = sadd.s32 %s94, 1
      %p98 = scmp.eq.s32.totalorder %s18, 1
      %p99 = scmp.ne.s32.totalorder %s94, %s96
      %p100 = scmp.eq.s32.totalorder %s18, 0
      %p101 = por %p99, %p100
      %p102 = scmp.ne.s32.totalorder %s94, %s96
      %p103 = scmp.eq.s32.totalorder %s23, 1
      %p104 = por %p102, %p103
      %p105 = scmp.ne.s32.totalorder %s96, %s97
      %p106 = scmp.eq.s32.totalorder %s23, 0
      %p107 = por %p105, %p106
      %p108 = scmp.ne.s32.totalorder %s96, %s97
      %p109 = scmp.eq.s32.totalorder %s24, 1
      %p110 = por %p108, %p109
      %p112 = scmp.ne.s32.totalorder %s97, %s111
      %p113 = scmp.eq.s32.totalorder %s24, 0
      %p114 = por %p112, %p113
      %s116 = sadd.s32 %s115, 1
      %p119 = scmp.eq.s32.totalorder %s18, 1
      %p120 = scmp.ne.s32.totalorder %s115, %s117
      %p121 = scmp.eq.s32.totalorder %s18, 0
      %p122 = por %p120, %p121
      %p123 = scmp.ne.s32.totalorder %s115, %s117
      %p124 = scmp.eq.s32.totalorder %s23, 1
      %p125 = por %p123, %p124
      %p126 = scmp.ne.s32.totalorder %s117, %s118
      %p127 = scmp.eq.s32.totalorder %s23, 0
      %p128 = por %p126, %p127
      %p129 = scmp.ne.s32.totalorder %s117, %s118
      %p130 = scmp.eq.s32.totalorder %s24, 1
      %p131 = por %p129, %p130
      %p133 = scmp.ne.s32.totalorder %s118, %s132
      %p134 = scmp.eq.s32.totalorder %s24, 0
      %p135 = por %p133, %p134
      %s136 = ssub.s32 %s18, %s25
      %p137 = scmp.eq.s32.totalorder %s136, 0
      %s139 = sadd.s32 %s138, 1
      %s140 = scalar_select %p137, %s138, %s139
      %p143 = pneg %p137
      %p144 = scmp.eq.s32.totalorder %s18, 1
      %p145 = por %p143, %p144
      %p146 = scmp.ne.s32.totalorder %s138, %s141
      %p147 = scmp.eq.s32.totalorder %s18, 0
      %p148 = por %p146, %p147
      %p149 = scmp.ne.s32.totalorder %s138, %s141
      %p150 = scmp.eq.s32.totalorder %s23, 1
      %p151 = por %p149, %p150
      %p152 = scmp.ne.s32.totalorder %s141, %s142
      %p153 = scmp.eq.s32.totalorder %s23, 0
      %p154 = por %p152, %p153
      %p155 = scmp.ne.s32.totalorder %s141, %s142
      %p156 = scmp.eq.s32.totalorder %s24, 1
      %p157 = por %p155, %p156
      %p159 = scmp.ne.s32.totalorder %s142, %s158
      %p160 = scmp.eq.s32.totalorder %s24, 0
      %p161 = por %p159, %p160
      %p162 = scmp.le.s32.totalorder 1, %s18
      %p163 = scmp.lt.s32.totalorder %s18, 3
      %p164 = pnand %p162, %p163
      %p165 = pneg %p164
      // Predicated region
      $region9: #{tpu_custom_call.1} parent=5 // pred_check
        _
      $region10: #{tpu_custom_call.1} parent=5 // pred_check_branch
        %167 = sbr.rel (%p164) target = $region12
      $region11: #{tpu_custom_call.1} parent=5 // pred_region
        %s168 = ssub.s32 %s18, 1
        // Predicated region
        $region13: #{tpu_custom_call.1} parent=11 // pred_check
          %p169 = pneg %p65
        $region14: #{tpu_custom_call.1} parent=11 // pred_check_branch
          %171 = sbr.rel (%p169) target = $region16
        $region15: #{tpu_custom_call.1} parent=11 // pred_region
          %s173 = ssub.s32 2048, 2048
          %174 = vsyncadd [#allocation6], %s173
          %s175 = sshll.u32 [#allocation5], 4
          %s176 = int_to_ptr.vmem [resolvable:$true] %s175
          %181 = dma.hbm_to_vmem [thread:$0]  %s1, 2048, %s176, [#allocation6], 128, 128, 8
        $region16: #{tpu_custom_call.1} parent=11 // pred_fallthru
          _
        // Predicated region
        $region17: #{tpu_custom_call.1} parent=11 // pred_check
          %p182 = pneg %p86
        $region18: #{tpu_custom_call.1} parent=11 // pred_check_branch
          %184 = sbr.rel (%p182) target = $region20
        $region19: #{tpu_custom_call.1} parent=11 // pred_region
          _
        $region20: #{tpu_custom_call.1} parent=11 // pred_fallthru
          _
        // Predicated region
        $region21: #{tpu_custom_call.1} parent=11 // pred_check
          %p185 = pneg %p107
        $region22: #{tpu_custom_call.1} parent=11 // pred_check_branch
          %187 = sbr.rel (%p185) target = $region24
        $region23: #{tpu_custom_call.1} parent=11 // pred_region
          %s189 = ssub.s32 2048, 2048
          %190 = vsyncadd [#allocation6], %s189
          %s191 = sshll.u32 [#allocation7], 4
          %s192 = int_to_ptr.vmem [resolvable:$true] %s191
          %197 = dma.hbm_to_vmem [thread:$0]  %s3, 2048, %s192, [#allocation6], 128, 128, 8
        $region24: #{tpu_custom_call.1} parent=11 // pred_fallthru
          _
        // Predicated region
        $region25: #{tpu_custom_call.1} parent=11 // pred_check
          %p198 = pneg %p128
        $region26: #{tpu_custom_call.1} parent=11 // pred_check_branch
          %200 = sbr.rel (%p198) target = $region28
        $region27: #{tpu_custom_call.1} parent=11 // pred_region
          _
        $region28: #{tpu_custom_call.1} parent=11 // pred_fallthru
          _
      $region12: #{tpu_custom_call.1} parent=5 // pred_fallthru
        _
      %p201 = scmp.lt.s32.totalorder %s18, 2
      // Predicated region
      $region29: #{tpu_custom_call.1} parent=5 // pred_check
        %p202 = pneg %p201
      $region30: #{tpu_custom_call.1} parent=5 // pred_check_branch
        %204 = sbr.rel (%p202) target = $region32
      $region31: #{tpu_custom_call.1} parent=5 // pred_region
        // Predicated region
        $region33: #{tpu_custom_call.1} parent=31 // pred_check
          %p205 = pneg %p38
        $region34: #{tpu_custom_call.1} parent=31 // pred_check_branch
          %207 = sbr.rel (%p205) target = $region36
        $region35: #{tpu_custom_call.1} parent=31 // pred_region
          %s208 = sand.u32 %s28, 1
          %s209 = scalar_lea.sflag [#allocation3], %s208
          %s210 = sand.u32 %s28, 1
          %s211 = smul.addr %s210, 128
          %s212 = scalar_lea.vmem [#allocation2], %s211
          %s213 = smul.u32 16, %s18
          %s215 = ssub.s32 2048, 2048
          %216 = vsyncadd %s209, %s215
          %s217 = smul.addr %s213, 128
          %s218 = scalar_lea.hbm %s0, %s217
          %s219 = sshll.u32 %s212, 4
          %s220 = int_to_ptr.vmem [resolvable:$true] %s219
          %225 = dma.hbm_to_vmem [thread:$0]  %s218, 2048, %s220, %s209, 128, 128, 8
        $region36: #{tpu_custom_call.1} parent=31 // pred_fallthru
          _
      $region32: #{tpu_custom_call.1} parent=5 // pred_fallthru
        _
      %p226 = scmp.le.s32.totalorder 1, %s18
      %p227 = scmp.lt.s32.totalorder %s18, 3
      %p228 = pnand %p226, %p227
      %p229 = pneg %p228
      // Predicated region
      $region37: #{tpu_custom_call.1} parent=5 // pred_check
        _
      $region38: #{tpu_custom_call.1} parent=5 // pred_check_branch
        %231 = sbr.rel (%p228) target = $region40
      $region39: #{tpu_custom_call.1} parent=5 // pred_region
        %s232 = ssub.s32 %s18, 1
        %s233 = sand.u32 %s31, 1
        %s234 = scalar_lea.sflag [#allocation3], %s233
        %s235 = sand.u32 %s31, 1
        %s236 = smul.addr %s235, 128
        %s237 = scalar_lea.vmem [#allocation2], %s236
        // Predicated region
        $region41: #{tpu_custom_call.1} parent=39 // pred_check
          %p238 = pneg %p44
        $region42: #{tpu_custom_call.1} parent=39 // pred_check_branch
          %240 = sbr.rel (%p238) target = $region44
        $region43: #{tpu_custom_call.1} parent=39 // pred_region
          %241 = dma.done %s234, 2048
        $region44: #{tpu_custom_call.1} parent=39 // pred_fallthru
          _
        // Predicated region
        $region45: #{tpu_custom_call.1} parent=39 // pred_check
          %p242 = pneg %p65
        $region46: #{tpu_custom_call.1} parent=39 // pred_check_branch
          %244 = sbr.rel (%p242) target = $region48
        $region47: #{tpu_custom_call.1} parent=39 // pred_region
          %245 = dma.done [#allocation6], 2048
        $region48: #{tpu_custom_call.1} parent=39 // pred_fallthru
          _
        // Predicated region
        $region49: #{tpu_custom_call.1} parent=39 // pred_check
          %p246 = pneg %p107
        $region50: #{tpu_custom_call.1} parent=39 // pred_check_branch
          %248 = sbr.rel (%p246) target = $region52
        $region51: #{tpu_custom_call.1} parent=39 // pred_region
          %249 = dma.done [#allocation6], 2048
        $region52: #{tpu_custom_call.1} parent=39 // pred_fallthru
          _
        %s250 = sand.u32 %s31, 1
        %s251 = scalar_lea.sflag [#allocation3], %s250
        %s252 = sand.u32 %s31, 1
        %s253 = smul.addr %s252, 128
        %s254 = scalar_lea.vmem [#allocation2], %s253
        %p255 = pneg %p44
        %p256 = pneg %p41
        %p257 = pneg %p65
        %p258 = pneg %p62
        %p259 = pneg %p86
        %p260 = pneg %p83
        %p261 = pneg %p107
        %p262 = pneg %p104
        %p263 = pneg %p128
        %p264 = pneg %p125
        %p265 = pneg %p154
        %p266 = pneg %p151
        %s267 = sand.u32 %s141, 1
        %s268 = scalar_lea.sflag [#allocation4], %s267
        %s269 = sand.u32 %s141, 1
        %s270 = smul.addr %s269, 128
        %s271 = scalar_lea.vmem [#allocation8], %s270
        %s272 = smul.u32 16, %s23
        %s273 = smul.u32 16, %s23
        %v274 = vld [vmem:[%s237] sm:$0xff]
        %v275 = vld [vmem:[%s237 + $0x8] sm:$0xff]
        %v276 = vld [vmem:[%s237 + $0x10] sm:$0xff]
        %v277 = vld [vmem:[%s237 + $0x18] sm:$0xff]
        %v278 = vld [vmem:[%s237 + $0x20] sm:$0xff]
        %v279 = vld [vmem:[%s237 + $0x28] sm:$0xff]
        %v280 = vld [vmem:[%s237 + $0x30] sm:$0xff]
        %v281 = vld [vmem:[%s237 + $0x38] sm:$0xff]
        %v282 = vld [vmem:[%s237 + $0x40] sm:$0xff]
        %v283 = vld [vmem:[%s237 + $0x48] sm:$0xff]
        %v284 = vld [vmem:[%s237 + $0x50] sm:$0xff]
        %v285 = vld [vmem:[%s237 + $0x58] sm:$0xff]
        %v286 = vld [vmem:[%s237 + $0x60] sm:$0xff]
        %v287 = vld [vmem:[%s237 + $0x68] sm:$0xff]
        %v288 = vld [vmem:[%s237 + $0x70] sm:$0xff]
        %v289 = vld [vmem:[%s237 + $0x78] sm:$0xff]
        %v290 = vld [vmem:[#allocation5] sm:$0xff]
        %v291 = vld [vmem:[#allocation5 + $0x8] sm:$0xff]
        %v292 = vld [vmem:[#allocation5 + $0x10] sm:$0xff]
        %v293 = vld [vmem:[#allocation5 + $0x18] sm:$0xff]
        %v294 = vld [vmem:[#allocation5 + $0x20] sm:$0xff]
        %v295 = vld [vmem:[#allocation5 + $0x28] sm:$0xff]
        %v296 = vld [vmem:[#allocation5 + $0x30] sm:$0xff]
        %v297 = vld [vmem:[#allocation5 + $0x38] sm:$0xff]
        %v298 = vld [vmem:[#allocation5 + $0x40] sm:$0xff]
        %v299 = vld [vmem:[#allocation5 + $0x48] sm:$0xff]
        %v300 = vld [vmem:[#allocation5 + $0x50] sm:$0xff]
        %v301 = vld [vmem:[#allocation5 + $0x58] sm:$0xff]
        %v302 = vld [vmem:[#allocation5 + $0x60] sm:$0xff]
        %v303 = vld [vmem:[#allocation5 + $0x68] sm:$0xff]
        %v304 = vld [vmem:[#allocation5 + $0x70] sm:$0xff]
        %v305 = vld [vmem:[#allocation5 + $0x78] sm:$0xff]
        %v306 = vld [vmem:[%s2] sm:$0x1]
        %v308 = vlaneseq
        %v309 = vshrl.u32 %v308, 7
        %v310 = vsub.s32 0, %v309
        %v311 = vrot.slane %v306, %v310
        %313 = vmatprep.subr.mxu0 0.0
        %314 = vmatpush1.msra.mxu0 %v290
        %315 = vmatprep.subr.mxu0 0.0
        %316 = vmatpush1.msra.mxu0 %v291
        %317 = vmatprep.subr.mxu0 0.0
        %318 = vmatpush1.msra.mxu0 %v292
        %319 = vmatprep.subr.mxu0 0.0
        %320 = vmatpush1.msra.mxu0 %v293
        %321 = vmatprep.subr.mxu0 0.0
        %322 = vmatpush1.msra.mxu0 %v294
        %323 = vmatprep.subr.mxu0 0.0
        %324 = vmatpush1.msra.mxu0 %v295
        %325 = vmatprep.subr.mxu0 0.0
        %326 = vmatpush1.msra.mxu0 %v296
        %327 = vmatprep.subr.mxu0 0.0
        %328 = vmatpush1.msra.mxu0 %v297
        %329 = vmatprep.subr.mxu0 0.0
        %330 = vmatpush1.msra.mxu0 %v298
        %331 = vmatprep.subr.mxu0 0.0
        %332 = vmatpush1.msra.mxu0 %v299
        %333 = vmatprep.subr.mxu0 0.0
        %334 = vmatpush1.msra.mxu0 %v300
        %335 = vmatprep.subr.mxu0 0.0
        %336 = vmatpush1.msra.mxu0 %v301
        %337 = vmatprep.subr.mxu0 0.0
        %338 = vmatpush1.msra.mxu0 %v302
        %339 = vmatprep.subr.mxu0 0.0
        %340 = vmatpush1.msra.mxu0 %v303
        %341 = vmatprep.subr.mxu0 0.0
        %342 = vmatpush1.msra.mxu0 %v304
        %343 = vmatprep.subr.mxu0 0.0
        %344 = vmatpush1.msra.mxu0 %v305
        %345 = vmatprep.subr.mxu0 0.0
        %346 = vmatpush1.msra.mxu0 0.0
        %347 = vmatprep.subr.mxu0 0.0
        %348 = vmatpush1.msra.mxu0 0.0
        %349 = vmatprep.subr.mxu0 0.0
        %350 = vmatpush1.msra.mxu0 0.0
        %351 = vmatprep.subr.mxu0 0.0
        %352 = vmatpush1.msra.mxu0 0.0
        %353 = vmatprep.subr.mxu0 0.0
        %354 = vmatpush1.msra.mxu0 0.0
        %355 = vmatprep.subr.mxu0 0.0
        %356 = vmatpush1.msra.mxu0 0.0
        %357 = vmatprep.subr.mxu0 0.0
        %358 = vmatpush1.msra.mxu0 0.0
        %359 = vmatprep.subr.mxu0 0.0
        %360 = vmatpush1.msra.mxu0 0.0
        %361 = vmatprep.subr.mxu0 0.0
        %362 = vmatpush1.msra.mxu0 0.0
        %363 = vmatprep.subr.mxu0 0.0
        %364 = vmatpush1.msra.mxu0 0.0
        %365 = vmatprep.subr.mxu0 0.0
        %366 = vmatpush1.msra.mxu0 0.0
        %367 = vmatprep.subr.mxu0 0.0
        %368 = vmatpush1.msra.mxu0 0.0
        %369 = vmatprep.subr.mxu0 0.0
        %370 = vmatpush1.msra.mxu0 0.0
        %371 = vmatprep.subr.mxu0 0.0
        %372 = vmatpush1.msra.mxu0 0.0
        %373 = vmatprep.subr.mxu0 0.0
        %374 = vmatpush1.msra.mxu0 0.0
        %375 = vmatprep.subr.mxu0 0.0
        %376 = vmatpush1.msra.mxu0 0.0
        %377 = vmatprep.mubr.f32.mxu0 0.0
        %378 = vmatmul.mubr.f32.gmra.mrb[0].mxu0 %v274
        %v379 = vpop.f32.mrb[0].mxu0
        %v380 = vadd.f32 %v311, %v379
        %v381 = vpop.f32.mrb[0].mxu0
        %382 = vmatprep.mubr.f32.mxu0 0.0
        %383 = vmatmul.mubr.f32.gmra.mrb[0].mxu0 %v275
        %v384 = vpop.f32.mrb[0].mxu0
        %v385 = vadd.f32 %v311, %v384
        %v386 = vpop.f32.mrb[0].mxu0
        %387 = vmatprep.mubr.f32.mxu0 0.0
        %388 = vmatmul.mubr.f32.gmra.mrb[0].mxu0 %v276
        %v389 = vpop.f32.mrb[0].mxu0
        %v390 = vadd.f32 %v311, %v389
        %v391 = vpop.f32.mrb[0].mxu0
        %392 = vmatprep.mubr.f32.mxu0 0.0
        %393 = vmatmul.mubr.f32.gmra.mrb[0].mxu0 %v277
        %v394 = vpop.f32.mrb[0].mxu0
        %v395 = vadd.f32 %v311, %v394
        %v396 = vpop.f32.mrb[0].mxu0
        %397 = vmatprep.mubr.f32.mxu0 0.0
        %398 = vmatmul.mubr.f32.gmra.mrb[0].mxu0 %v278
        %v399 = vpop.f32.mrb[0].mxu0
        %v400 = vadd.f32 %v311, %v399
        %v401 = vpop.f32.mrb[0].mxu0
        %402 = vmatprep.mubr.f32.mxu0 0.0
        %403 = vmatmul.mubr.f32.gmra.mrb[0].mxu0 %v279
        %v404 = vpop.f32.mrb[0].mxu0
        %v405 = vadd.f32 %v311, %v404
        %v406 = vpop.f32.mrb[0].mxu0
        %407 = vmatprep.mubr.f32.mxu0 0.0
        %408 = vmatmul.mubr.f32.gmra.mrb[0].mxu0 %v280
        %v409 = vpop.f32.mrb[0].mxu0
        %v410 = vadd.f32 %v311, %v409
        %v411 = vpop.f32.mrb[0].mxu0
        %412 = vmatprep.mubr.f32.mxu0 0.0
        %413 = vmatmul.mubr.f32.gmra.mrb[0].mxu0 %v281
        %v414 = vpop.f32.mrb[0].mxu0
        %v415 = vadd.f32 %v311, %v414
        %v416 = vpop.f32.mrb[0].mxu0
        %417 = vmatprep.mubr.f32.mxu0 0.0
        %418 = vmatmul.mubr.f32.gmra.mrb[0].mxu0 %v282
        %v419 = vpop.f32.mrb[0].mxu0
        %v420 = vadd.f32 %v311, %v419
        %v421 = vpop.f32.mrb[0].mxu0
        %422 = vmatprep.mubr.f32.mxu0 0.0
        %423 = vmatmul.mubr.f32.gmra.mrb[0].mxu0 %v283
        %v424 = vpop.f32.mrb[0].mxu0
        %v425 = vadd.f32 %v311, %v424
        %v426 = vpop.f32.mrb[0].mxu0
        %427 = vmatprep.mubr.f32.mxu0 0.0
        %428 = vmatmul.mubr.f32.gmra.mrb[0].mxu0 %v284
        %v429 = vpop.f32.mrb[0].mxu0
        %v430 = vadd.f32 %v311, %v429
        %v431 = vpop.f32.mrb[0].mxu0
        %432 = vmatprep.mubr.f32.mxu0 0.0
        %433 = vmatmul.mubr.f32.gmra.mrb[0].mxu0 %v285
        %v434 = vpop.f32.mrb[0].mxu0
        %v435 = vadd.f32 %v311, %v434
        %v436 = vpop.f32.mrb[0].mxu0
        %437 = vmatprep.mubr.f32.mxu0 0.0
        %438 = vmatmul.mubr.f32.gmra.mrb[0].mxu0 %v286
        %v439 = vpop.f32.mrb[0].mxu0
        %v440 = vadd.f32 %v311, %v439
        %v441 = vpop.f32.mrb[0].mxu0
        %442 = vmatprep.mubr.f32.mxu0 0.0
        %443 = vmatmul.mubr.f32.gmra.mrb[0].mxu0 %v287
        %v444 = vpop.f32.mrb[0].mxu0
        %v445 = vadd.f32 %v311, %v444
        %v446 = vpop.f32.mrb[0].mxu0
        %447 = vmatprep.mubr.f32.mxu0 0.0
        %448 = vmatmul.mubr.f32.gmra.mrb[0].mxu0 %v288
        %v449 = vpop.f32.mrb[0].mxu0
        %v450 = vadd.f32 %v311, %v449
        %v451 = vpop.f32.mrb[0].mxu0
        %452 = vmatprep.mubr.f32.mxu0 0.0
        %453 = vmatmul.mubr.f32.gmra.mrb[0].mxu0 %v289
        %v454 = vpop.f32.mrb[0].mxu0
        %v455 = vadd.f32 %v311, %v454
        %v456 = vpop.f32.mrb[0].mxu0
        %457 = vdwg.mxu0
        %v458 = vmul.f32 %v380, %v380
        %v459 = vmul.f32 %v385, %v385
        %v460 = vmul.f32 %v390, %v390
        %v461 = vmul.f32 %v395, %v395
        %v462 = vmul.f32 %v400, %v400
        %v463 = vmul.f32 %v405, %v405
        %v464 = vmul.f32 %v410, %v410
        %v465 = vmul.f32 %v415, %v415
        %v466 = vmul.f32 %v420, %v420
        %v467 = vmul.f32 %v425, %v425
        %v468 = vmul.f32 %v430, %v430
        %v469 = vmul.f32 %v435, %v435
        %v470 = vmul.f32 %v440, %v440
        %v471 = vmul.f32 %v445, %v445
        %v472 = vmul.f32 %v450, %v450
        %v473 = vmul.f32 %v455, %v455
        %v474 = vmul.f32 %v380, %v458
        %v475 = vmul.f32 %v385, %v459
        %v476 = vmul.f32 %v390, %v460
        %v477 = vmul.f32 %v395, %v461
        %v478 = vmul.f32 %v400, %v462
        %v479 = vmul.f32 %v405, %v463
        %v480 = vmul.f32 %v410, %v464
        %v481 = vmul.f32 %v415, %v465
        %v482 = vmul.f32 %v420, %v466
        %v483 = vmul.f32 %v425, %v467
        %v484 = vmul.f32 %v430, %v468
        %v485 = vmul.f32 %v435, %v469
        %v486 = vmul.f32 %v440, %v470
        %v487 = vmul.f32 %v445, %v471
        %v488 = vmul.f32 %v450, %v472
        %v489 = vmul.f32 %v455, %v473
        %v490 = vmul.f32 %v474, 0.044715
        %v491 = vmul.f32 %v475, 0.044715
        %v492 = vmul.f32 %v476, 0.044715
        %v493 = vmul.f32 %v477, 0.044715
        %v494 = vmul.f32 %v478, 0.044715
        %v495 = vmul.f32 %v479, 0.044715
        %v496 = vmul.f32 %v480, 0.044715
        %v497 = vmul.f32 %v481, 0.044715
        %v498 = vmul.f32 %v482, 0.044715
        %v499 = vmul.f32 %v483, 0.044715
        %v500 = vmul.f32 %v484, 0.044715
        %v501 = vmul.f32 %v485, 0.044715
        %v502 = vmul.f32 %v486, 0.044715
        %v503 = vmul.f32 %v487, 0.044715
        %v504 = vmul.f32 %v488, 0.044715
        %v505 = vmul.f32 %v489, 0.044715
        %v506 = vadd.f32 %v380, %v490
        %v507 = vadd.f32 %v385, %v491
        %v508 = vadd.f32 %v390, %v492
        %v509 = vadd.f32 %v395, %v493
        %v510 = vadd.f32 %v400, %v494
        %v511 = vadd.f32 %v405, %v495
        %v512 = vadd.f32 %v410, %v496
        %v513 = vadd.f32 %v415, %v497
        %v514 = vadd.f32 %v420, %v498
        %v515 = vadd.f32 %v425, %v499
        %v516 = vadd.f32 %v430, %v500
        %v517 = vadd.f32 %v435, %v501
        %v518 = vadd.f32 %v440, %v502
        %v519 = vadd.f32 %v445, %v503
        %v520 = vadd.f32 %v450, %v504
        %v521 = vadd.f32 %v455, %v505
        %v522 = vmul.f32 %v506, 0.7978846
        %v523 = vmul.f32 %v507, 0.7978846
        %v524 = vmul.f32 %v508, 0.7978846
        %v525 = vmul.f32 %v509, 0.7978846
        %v526 = vmul.f32 %v510, 0.7978846
        %v527 = vmul.f32 %v511, 0.7978846
        %v528 = vmul.f32 %v512, 0.7978846
        %v529 = vmul.f32 %v513, 0.7978846
        %v530 = vmul.f32 %v514, 0.7978846
        %v531 = vmul.f32 %v515, 0.7978846
        %v532 = vmul.f32 %v516, 0.7978846
        %v533 = vmul.f32 %v517, 0.7978846
        %v534 = vmul.f32 %v518, 0.7978846
        %v535 = vmul.f32 %v519, 0.7978846
        %v536 = vmul.f32 %v520, 0.7978846
        %v537 = vmul.f32 %v521, 0.7978846
        %v538 = vtanh.pop %v522
        %v539 = vtanh.pop %v523
        %v540 = vtanh.pop %v524
        %v541 = vtanh.pop %v525
        %v542 = vtanh.pop %v526
        %v543 = vtanh.pop %v527
        %v544 = vtanh.pop %v528
        %v545 = vtanh.pop %v529
        %v546 = vtanh.pop %v530
        %v547 = vtanh.pop %v531
        %v548 = vtanh.pop %v532
        %v549 = vtanh.pop %v533
        %v550 = vtanh.pop %v534
        %v551 = vtanh.pop %v535
        %v552 = vtanh.pop %v536
        %v553 = vtanh.pop %v537
        %v554 = vadd.f32 %v538, 1.0
        %v555 = vadd.f32 %v539, 1.0
        %v556 = vadd.f32 %v540, 1.0
        %v557 = vadd.f32 %v541, 1.0
        %v558 = vadd.f32 %v542, 1.0
        %v559 = vadd.f32 %v543, 1.0
        %v560 = vadd.f32 %v544, 1.0
        %v561 = vadd.f32 %v545, 1.0
        %v562 = vadd.f32 %v546, 1.0
        %v563 = vadd.f32 %v547, 1.0
        %v564 = vadd.f32 %v548, 1.0
        %v565 = vadd.f32 %v549, 1.0
        %v566 = vadd.f32 %v550, 1.0
        %v567 = vadd.f32 %v551, 1.0
        %v568 = vadd.f32 %v552, 1.0
        %v569 = vadd.f32 %v553, 1.0
        %v570 = vmul.f32 %v554, 0.5
        %v571 = vmul.f32 %v555, 0.5
        %v572 = vmul.f32 %v556, 0.5
        %v573 = vmul.f32 %v557, 0.5
        %v574 = vmul.f32 %v558, 0.5
        %v575 = vmul.f32 %v559, 0.5
        %v576 = vmul.f32 %v560, 0.5
        %v577 = vmul.f32 %v561, 0.5
        %v578 = vmul.f32 %v562, 0.5
        %v579 = vmul.f32 %v563, 0.5
        %v580 = vmul.f32 %v564, 0.5
        %v581 = vmul.f32 %v565, 0.5
        %v582 = vmul.f32 %v566, 0.5
        %v583 = vmul.f32 %v567, 0.5
        %v584 = vmul.f32 %v568, 0.5
        %v585 = vmul.f32 %v569, 0.5
        %v586 = vmul.f32 %v380, %v570
        %v587 = vmul.f32 %v385, %v571
        %v588 = vmul.f32 %v390, %v572
        %v589 = vmul.f32 %v395, %v573
        %v590 = vmul.f32 %v400, %v574
        %v591 = vmul.f32 %v405, %v575
        %v592 = vmul.f32 %v410, %v576
        %v593 = vmul.f32 %v415, %v577
        %v594 = vmul.f32 %v420, %v578
        %v595 = vmul.f32 %v425, %v579
        %v596 = vmul.f32 %v430, %v580
        %v597 = vmul.f32 %v435, %v581
        %v598 = vmul.f32 %v440, %v582
        %v599 = vmul.f32 %v445, %v583
        %v600 = vmul.f32 %v450, %v584
        %v601 = vmul.f32 %v455, %v585
        %v602 = vld [vmem:[#allocation7] sm:$0xff]
        %v603 = vld [vmem:[#allocation7 + $0x8] sm:$0xff]
        %v604 = vld [vmem:[#allocation7 + $0x10] sm:$0xff]
        %v605 = vld [vmem:[#allocation7 + $0x18] sm:$0xff]
        %v606 = vld [vmem:[#allocation7 + $0x20] sm:$0xff]
        %v607 = vld [vmem:[#allocation7 + $0x28] sm:$0xff]
        %v608 = vld [vmem:[#allocation7 + $0x30] sm:$0xff]
        %v609 = vld [vmem:[#allocation7 + $0x38] sm:$0xff]
        %v610 = vld [vmem:[#allocation7 + $0x40] sm:$0xff]
        %v611 = vld [vmem:[#allocation7 + $0x48] sm:$0xff]
        %v612 = vld [vmem:[#allocation7 + $0x50] sm:$0xff]
        %v613 = vld [vmem:[#allocation7 + $0x58] sm:$0xff]
        %v614 = vld [vmem:[#allocation7 + $0x60] sm:$0xff]
        %v615 = vld [vmem:[#allocation7 + $0x68] sm:$0xff]
        %v616 = vld [vmem:[#allocation7 + $0x70] sm:$0xff]
        %v617 = vld [vmem:[#allocation7 + $0x78] sm:$0xff]
        %v618 = vld [vmem:[%s4] sm:$0x1]
        %v620 = vlaneseq
        %v621 = vshrl.u32 %v620, 7
        %v622 = vsub.s32 0, %v621
        %v623 = vrot.slane %v618, %v622
        %625 = vmatprep.subr.mxu0 0.0
        %626 = vmatpush1.msra.mxu0 %v602
        %627 = vmatprep.subr.mxu0 0.0
        %628 = vmatpush1.msra.mxu0 %v603
        %629 = vmatprep.subr.mxu0 0.0
        %630 = vmatpush1.msra.mxu0 %v604
        %631 = vmatprep.subr.mxu0 0.0
        %632 = vmatpush1.msra.mxu0 %v605
        %633 = vmatprep.subr.mxu0 0.0
        %634 = vmatpush1.msra.mxu0 %v606
        %635 = vmatprep.subr.mxu0 0.0
        %636 = vmatpush1.msra.mxu0 %v607
        %637 = vmatprep.subr.mxu0 0.0
        %638 = vmatpush1.msra.mxu0 %v608
        %639 = vmatprep.subr.mxu0 0.0
        %640 = vmatpush1.msra.mxu0 %v609
        %641 = vmatprep.subr.mxu0 0.0
        %642 = vmatpush1.msra.mxu0 %v610
        %643 = vmatprep.subr.mxu0 0.0
        %644 = vmatpush1.msra.mxu0 %v611
        %645 = vmatprep.subr.mxu0 0.0
        %646 = vmatpush1.msra.mxu0 %v612
        %647 = vmatprep.subr.mxu0 0.0
        %648 = vmatpush1.msra.mxu0 %v613
        %649 = vmatprep.subr.mxu0 0.0
        %650 = vmatpush1.msra.mxu0 %v614
        %651 = vmatprep.subr.mxu0 0.0
        %652 = vmatpush1.msra.mxu0 %v615
        %653 = vmatprep.subr.mxu0 0.0
        %654 = vmatpush1.msra.mxu0 %v616
        %655 = vmatprep.subr.mxu0 0.0
        %656 = vmatpush1.msra.mxu0 %v617
        %657 = vmatprep.subr.mxu0 0.0
        %658 = vmatpush1.msra.mxu0 0.0
        %659 = vmatprep.subr.mxu0 0.0
        %660 = vmatpush1.msra.mxu0 0.0
        %661 = vmatprep.subr.mxu0 0.0
        %662 = vmatpush1.msra.mxu0 0.0
        %663 = vmatprep.subr.mxu0 0.0
        %664 = vmatpush1.msra.mxu0 0.0
        %665 = vmatprep.subr.mxu0 0.0
        %666 = vmatpush1.msra.mxu0 0.0
        %667 = vmatprep.subr.mxu0 0.0
        %668 = vmatpush1.msra.mxu0 0.0
        %669 = vmatprep.subr.mxu0 0.0
        %670 = vmatpush1.msra.mxu0 0.0
        %671 = vmatprep.subr.mxu0 0.0
        %672 = vmatpush1.msra.mxu0 0.0
        %673 = vmatprep.subr.mxu0 0.0
        %674 = vmatpush1.msra.mxu0 0.0
        %675 = vmatprep.subr.mxu0 0.0
        %676 = vmatpush1.msra.mxu0 0.0
        %677 = vmatprep.subr.mxu0 0.0
        %678 = vmatpush1.msra.mxu0 0.0
        %679 = vmatprep.subr.mxu0 0.0
        %680 = vmatpush1.msra.mxu0 0.0
        %681 = vmatprep.subr.mxu0 0.0
        %682 = vmatpush1.msra.mxu0 0.0
        %683 = vmatprep.subr.mxu0 0.0
        %684 = vmatpush1.msra.mxu0 0.0
        %685 = vmatprep.subr.mxu0 0.0
        %686 = vmatpush1.msra.mxu0 0.0
        %687 = vmatprep.subr.mxu0 0.0
        %688 = vmatpush1.msra.mxu0 0.0
        %689 = vmatprep.mubr.f32.mxu0 0.0
        %690 = vmatmul.mubr.f32.gmra.mrb[0].mxu0 %v586
        %v691 = vpop.f32.mrb[0].mxu0
        %v692 = vadd.f32 %v623, %v691
        %v693 = vpop.f32.mrb[0].mxu0
        %694 = vmatprep.mubr.f32.mxu0 0.0
        %695 = vmatmul.mubr.f32.gmra.mrb[0].mxu0 %v587
        %v696 = vpop.f32.mrb[0].mxu0
        %v697 = vadd.f32 %v623, %v696
        %v698 = vpop.f32.mrb[0].mxu0
        %699 = vmatprep.mubr.f32.mxu0 0.0
        %700 = vmatmul.mubr.f32.gmra.mrb[0].mxu0 %v588
        %v701 = vpop.f32.mrb[0].mxu0
        %v702 = vadd.f32 %v623, %v701
        %v703 = vpop.f32.mrb[0].mxu0
        %704 = vmatprep.mubr.f32.mxu0 0.0
        %705 = vmatmul.mubr.f32.gmra.mrb[0].mxu0 %v589
        %v706 = vpop.f32.mrb[0].mxu0
        %v707 = vadd.f32 %v623, %v706
        %v708 = vpop.f32.mrb[0].mxu0
        %709 = vmatprep.mubr.f32.mxu0 0.0
        %710 = vmatmul.mubr.f32.gmra.mrb[0].mxu0 %v590
        %v711 = vpop.f32.mrb[0].mxu0
        %v712 = vadd.f32 %v623, %v711
        %v713 = vpop.f32.mrb[0].mxu0
        %714 = vmatprep.mubr.f32.mxu0 0.0
        %715 = vmatmul.mubr.f32.gmra.mrb[0].mxu0 %v591
        %v716 = vpop.f32.mrb[0].mxu0
        %v717 = vadd.f32 %v623, %v716
        %v718 = vpop.f32.mrb[0].mxu0
        %719 = vmatprep.mubr.f32.mxu0 0.0
        %720 = vmatmul.mubr.f32.gmra.mrb[0].mxu0 %v592
        %v721 = vpop.f32.mrb[0].mxu0
        %v722 = vadd.f32 %v623, %v721
        %v723 = vpop.f32.mrb[0].mxu0
        %724 = vmatprep.mubr.f32.mxu0 0.0
        %725 = vmatmul.mubr.f32.gmra.mrb[0].mxu0 %v593
        %v726 = vpop.f32.mrb[0].mxu0
        %v727 = vadd.f32 %v623, %v726
        %v728 = vpop.f32.mrb[0].mxu0
        %729 = vmatprep.mubr.f32.mxu0 0.0
        %730 = vmatmul.mubr.f32.gmra.mrb[0].mxu0 %v594
        %v731 = vpop.f32.mrb[0].mxu0
        %v732 = vadd.f32 %v623, %v731
        %v733 = vpop.f32.mrb[0].mxu0
        %734 = vmatprep.mubr.f32.mxu0 0.0
        %735 = vmatmul.mubr.f32.gmra.mrb[0].mxu0 %v595
        %v736 = vpop.f32.mrb[0].mxu0
        %v737 = vadd.f32 %v623, %v736
        %v738 = vpop.f32.mrb[0].mxu0
        %739 = vmatprep.mubr.f32.mxu0 0.0
        %740 = vmatmul.mubr.f32.gmra.mrb[0].mxu0 %v596
        %v741 = vpop.f32.mrb[0].mxu0
        %v742 = vadd.f32 %v623, %v741
        %v743 = vpop.f32.mrb[0].mxu0
        %744 = vmatprep.mubr.f32.mxu0 0.0
        %745 = vmatmul.mubr.f32.gmra.mrb[0].mxu0 %v597
        %v746 = vpop.f32.mrb[0].mxu0
        %v747 = vadd.f32 %v623, %v746
        %v748 = vpop.f32.mrb[0].mxu0
        %749 = vmatprep.mubr.f32.mxu0 0.0
        %750 = vmatmul.mubr.f32.gmra.mrb[0].mxu0 %v598
        %v751 = vpop.f32.mrb[0].mxu0
        %v752 = vadd.f32 %v623, %v751
        %v753 = vpop.f32.mrb[0].mxu0
        %754 = vmatprep.mubr.f32.mxu0 0.0
        %755 = vmatmul.mubr.f32.gmra.mrb[0].mxu0 %v599
        %v756 = vpop.f32.mrb[0].mxu0
        %v757 = vadd.f32 %v623, %v756
        %v758 = vpop.f32.mrb[0].mxu0
        %759 = vmatprep.mubr.f32.mxu0 0.0
        %760 = vmatmul.mubr.f32.gmra.mrb[0].mxu0 %v600
        %v761 = vpop.f32.mrb[0].mxu0
        %v762 = vadd.f32 %v623, %v761
        %v763 = vpop.f32.mrb[0].mxu0
        %764 = vmatprep.mubr.f32.mxu0 0.0
        %765 = vmatmul.mubr.f32.gmra.mrb[0].mxu0 %v601
        %v766 = vpop.f32.mrb[0].mxu0
        %v767 = vadd.f32 %v623, %v766
        %v768 = vpop.f32.mrb[0].mxu0
        %769 = vdwg.mxu0
        %v770 = vadd.f32 %v692, %v274
        %v771 = vadd.f32 %v697, %v275
        %v772 = vadd.f32 %v702, %v276
        %v773 = vadd.f32 %v707, %v277
        %v774 = vadd.f32 %v712, %v278
        %v775 = vadd.f32 %v717, %v279
        %v776 = vadd.f32 %v722, %v280
        %v777 = vadd.f32 %v727, %v281
        %v778 = vadd.f32 %v732, %v282
        %v779 = vadd.f32 %v737, %v283
        %v780 = vadd.f32 %v742, %v284
        %v781 = vadd.f32 %v747, %v285
        %v782 = vadd.f32 %v752, %v286
        %v783 = vadd.f32 %v757, %v287
        %v784 = vadd.f32 %v762, %v288
        %v785 = vadd.f32 %v767, %v289
        %786 = vst [vmem:[%s271] sm:$0xff] %v770
        %787 = vst [vmem:[%s271 + $0x8] sm:$0xff] %v771
        %788 = vst [vmem:[%s271 + $0x10] sm:$0xff] %v772
        %789 = vst [vmem:[%s271 + $0x18] sm:$0xff] %v773
        %790 = vst [vmem:[%s271 + $0x20] sm:$0xff] %v774
        %791 = vst [vmem:[%s271 + $0x28] sm:$0xff] %v775
        %792 = vst [vmem:[%s271 + $0x30] sm:$0xff] %v776
        %793 = vst [vmem:[%s271 + $0x38] sm:$0xff] %v777
        %794 = vst [vmem:[%s271 + $0x40] sm:$0xff] %v778
        %795 = vst [vmem:[%s271 + $0x48] sm:$0xff] %v779
        %796 = vst [vmem:[%s271 + $0x50] sm:$0xff] %v780
        %797 = vst [vmem:[%s271 + $0x58] sm:$0xff] %v781
        %798 = vst [vmem:[%s271 + $0x60] sm:$0xff] %v782
        %799 = vst [vmem:[%s271 + $0x68] sm:$0xff] %v783
        %800 = vst [vmem:[%s271 + $0x70] sm:$0xff] %v784
        %801 = vst [vmem:[%s271 + $0x78] sm:$0xff] %v785
        %s802 = sand.u32 %s141, 1
        %s803 = scalar_lea.sflag [#allocation4], %s802
        %s804 = sand.u32 %s141, 1
        %s805 = smul.addr %s804, 128
        %s806 = scalar_lea.vmem [#allocation8], %s805
        // Predicated region
        $region53: #{tpu_custom_call.1} parent=39 // pred_check
          %p807 = pneg %p151
        $region54: #{tpu_custom_call.1} parent=39 // pred_check_branch
          %809 = sbr.rel (%p807) target = $region56
        $region55: #{tpu_custom_call.1} parent=39 // pred_region
          %s810 = smul.u32 16, %s23
          %s812 = ssub.s32 2048, 2048
          %813 = vsyncadd %s803, %s812
          %s814 = smul.addr %s810, 128
          %s815 = scalar_lea.hbm %s5, %s814
          %s816 = sshll.u32 %s806, 4
          %s817 = int_to_ptr.vmem [resolvable:$true] %s816
          %822 = dma.vmem_to_hbm [thread:$0]  %s817, 2048, %s815, %s803, 128, 128, 8
        $region56: #{tpu_custom_call.1} parent=39 // pred_fallthru
          _
      $region40: #{tpu_custom_call.1} parent=5 // pred_fallthru
        _
      %p823 = scmp.le.s32.totalorder 2, %s18
      // Predicated region
      $region57: #{tpu_custom_call.1} parent=5 // pred_check
        %p824 = pneg %p823
      $region58: #{tpu_custom_call.1} parent=5 // pred_check_branch
        %826 = sbr.rel (%p824) target = $region60
      $region59: #{tpu_custom_call.1} parent=5 // pred_region
        %s827 = ssub.s32 %s18, 2
        // Predicated region
        $region61: #{tpu_custom_call.1} parent=59 // pred_check
          %p828 = pneg %p157
        $region62: #{tpu_custom_call.1} parent=59 // pred_check_branch
          %830 = sbr.rel (%p828) target = $region64
        $region63: #{tpu_custom_call.1} parent=59 // pred_region
          %s831 = sand.u32 %s142, 1
          %s832 = scalar_lea.sflag [#allocation4], %s831
          %s833 = sand.u32 %s142, 1
          %s834 = smul.addr %s833, 128
          %s835 = scalar_lea.vmem [#allocation8], %s834
          %836 = dma.done %s832, 2048
        $region64: #{tpu_custom_call.1} parent=59 // pred_fallthru
          _
      $region60: #{tpu_custom_call.1} parent=5 // pred_fallthru
        _
    $region6: #{tpu_custom_call.1} parent=1 // loop_footer
      %s22 = sadd.s32 1, %s18
    $region7: #{tpu_custom_call.1} parent=1 // loop_footer_branch
      %17 = sbr.rel target = $region3
    $region8: #{tpu_custom_call.1} parent=1 // loop_exit
      _
    %837 = vsyncpa [#allocation3], 1
    %s838 = scalar_lea.sflag [#allocation3], 1
    %839 = vsyncpa %s838, 1
    %840 = vsyncpa [#allocation6], 1
    %841 = vsyncpa [#allocation4], 1
    %s842 = scalar_lea.sflag [#allocation4], 1
    %843 = vsyncpa %s842, 1

// kernel: tpu_custom_call.1
$region0: #{tpu_custom_call.1}
  #allocation0 [shape = 'u32[]', space=smem, size = 0x4, offset = 0x4, fixed_abs, tag = 'smem constant byte address 0x4 - core index']
  #allocation1 [shape = 'u32[144,128]{1,0:T(1,128)}', space=vmem, size = 0x12000, scoped, tag = 'internal scratch']
  %s0 = inlined_call_operand.hbm [shape: f32[256,128], index: 0, kind: input, shape index: {}]
  %s1 = inlined_call_operand.hbm [shape: f32[128,128], index: 1, kind: input, shape index: {}]
  %s2 = inlined_call_operand.vmem [shape: f32[1,128], index: 2, kind: input, shape index: {}]
  %s3 = inlined_call_operand.hbm [shape: f32[128,128], index: 3, kind: input, shape index: {}]
  %s4 = inlined_call_operand.vmem [shape: f32[1,128], index: 4, kind: input, shape index: {}]
  %s5 = inlined_call_operand.hbm [shape: f32[256,128], index: 5, kind: output, shape index: {}]
  %s6 = sld [smem:[#allocation0]]
  $region65: #{tpu_custom_call.1} parent=0
    _
  %s8 = ssub.s32 1, %s6
  %s9 = scalar_select 0, %s8, %s6
  $region1: #{tpu_custom_call.1} parent=0
    #allocation2 [shape = 'u8[131072]{0}', space=vmem, size = 0x20000, scoped, tag = 'input window, operand 0']
    #allocation3 [shape = 's32[2]{0}', space=sflag, size = 0x8, scoped, tag = 'scoped memory for tpu_custom_call.1']
    #allocation4 [shape = 's32[2]{0}', space=sflag, size = 0x8, scoped, tag = 'scoped memory for tpu_custom_call.1']
    #allocation5 [shape = 'u8[65536]{0}', space=vmem, size = 0x10000, scoped, tag = 'input window, operand 1, single buffered']
    #allocation6 [shape = 's32[1]{0}', space=sflag, size = 0x4, scoped, tag = 'scoped memory for tpu_custom_call.1']
    #allocation7 [shape = 'u8[65536]{0}', space=vmem, size = 0x10000, scoped, tag = 'input window, operand 3, single buffered']
    #allocation8 [shape = 'u8[131072]{0}', space=vmem, size = 0x20000, scoped, tag = 'output window, operand 0']
    %10 = vsyncpa [#allocation3], 0
    %s11 = scalar_lea.sflag [#allocation3], 1
    %12 = vsyncpa %s11, 0
    %13 = vsyncpa [#allocation6], 0
    %14 = vsyncpa [#allocation4], 0
    %s15 = scalar_lea.sflag [#allocation4], 1
    %16 = vsyncpa %s15, 0
    loop: start=0, step=1, limit=4
    $region2: #{tpu_custom_call.1} parent=1 // loop_pre_header
      _
    $region3: #{tpu_custom_call.1} parent=1 // loop_header
      %s18 = sphi 0, %s22
      %p19 = scmp.ge.s32.totalorder %s18, 4
      %s28 = sphi 0, %s30
      %s31 = sphi 0, %s28
      %s32 = sphi 0, %s31
      %s48 = sphi 0, %s32
      %s52 = sphi 0, %s52
      %s54 = sphi 0, %s52
      %s55 = sphi 0, %s54
      %s69 = sphi 0, %s55
      %s73 = sphi 0, %s73
      %s75 = sphi 0, %s73
      %s76 = sphi 0, %s75
      %s90 = sphi 0, %s76
      %s94 = sphi 0, %s94
      %s96 = sphi 0, %s94
      %s97 = sphi 0, %s96
      %s111 = sphi 0, %s97
      %s115 = sphi 0, %s115
      %s117 = sphi 0, %s115
      %s118 = sphi 0, %s117
      %s132 = sphi 0, %s118
      %s138 = sphi 0, %s140
      %s141 = sphi 0, %s138
      %s142 = sphi 0, %s141
      %s158 = sphi 0, %s142
    $region4: #{tpu_custom_call.1} parent=1 // loop_header_branch
      %21 = sbr.rel (%p19) target = $region8
    $region5: #{tpu_custom_call.1} parent=1 // loop_body
      %s23 = ssub.s32 %s18, 1
      %s24 = ssub.s32 %s18, 2
      %s25 = sadd.s32 %s18, 1
      %s26 = ssub.s32 %s18, %s25
      %p27 = scmp.eq.s32.totalorder %s26, 0
      %s29 = sadd.s32 %s28, 1
      %s30 = scalar_select %p27, %s28, %s29
      %p33 = pneg %p27
      %p34 = scmp.eq.s32.totalorder %s18, 1
      %p35 = por %p33, %p34
      %p36 = scmp.ne.s32.totalorder %s28, %s31
      %p37 = scmp.eq.s32.totalorder %s18, 0
      %p38 = por %p36, %p37
      %p39 = scmp.ne.s32.totalorder %s28, %s31
      %p40 = scmp.eq.s32.totalorder %s23, 1
      %p41 = por %p39, %p40
      %p42 = scmp.ne.s32.totalorder %s31, %s32
      %p43 = scmp.eq.s32.totalorder %s23, 0
      %p44 = por %p42, %p43
      %p45 = scmp.ne.s32.totalorder %s31, %s32
      %p46 = scmp.eq.s32.totalorder %s24, 1
      %p47 = por %p45, %p46
      %p49 = scmp.ne.s32.totalorder %s32, %s48
      %p50 = scmp.eq.s32.totalorder %s24, 0
      %p51 = por %p49, %p50
      %s53 = sadd.s32 %s52, 1
      %p56 = scmp.eq.s32.totalorder %s18, 1
      %p57 = scmp.ne.s32.totalorder %s52, %s54
      %p58 = scmp.eq.s32.totalorder %s18, 0
      %p59 = por %p57, %p58
      %p60 = scmp.ne.s32.totalorder %s52, %s54
      %p61 = scmp.eq.s32.totalorder %s23, 1
      %p62 = por %p60, %p61
      %p63 = scmp.ne.s32.totalorder %s54, %s55
      %p64 = scmp.eq.s32.totalorder %s23, 0
      %p65 = por %p63, %p64
      %p66 = scmp.ne.s32.totalorder %s54, %s55
      %p67 = scmp.eq.s32.totalorder %s24, 1
      %p68 = por %p66, %p67
      %p70 = scmp.ne.s32.totalorder %s55, %s69
      %p71 = scmp.eq.s32.totalorder %s24, 0
      %p72 = por %p70, %p71
      %s74 = sadd.s32 %s73, 1
      %p77 = scmp.eq.s32.totalorder %s18, 1
      %p78 = scmp.ne.s32.totalorder %s73, %s75
      %p79 = scmp.eq.s32.totalorder %s18, 0
      %p80 = por %p78, %p79
      %p81 = scmp.ne.s32.totalorder %s73, %s75
      %p82 = scmp.eq.s32.totalorder %s23, 1
      %p83 = por %p81, %p82
      %p84 = scmp.ne.s32.totalorder %s75, %s76
      %p85 = scmp.eq.s32.totalorder %s23, 0
      %p86 = por %p84, %p85
      %p87 = scmp.ne.s32.totalorder %s75, %s76
      %p88 = scmp.eq.s32.totalorder %s24, 1
      %p89 = por %p87, %p88
      %p91 = scmp.ne.s32.totalorder %s76, %s90
      %p92 = scmp.eq.s32.totalorder %s24, 0
      %p93 = por %p91, %p92
      %s95 = sadd.s32 %s94, 1
      %p98 = scmp.eq.s32.totalorder %s18, 1
      %p99 = scmp.ne.s32.totalorder %s94, %s96
      %p100 = scmp.eq.s32.totalorder %s18, 0
      %p101 = por %p99, %p100
      %p102 = scmp.ne.s32.totalorder %s94, %s96
      %p103 = scmp.eq.s32.totalorder %s23, 1
      %p104 = por %p102, %p103
      %p105 = scmp.ne.s32.totalorder %s96, %s97
      %p106 = scmp.eq.s32.totalorder %s23, 0
      %p107 = por %p105, %p106
      %p108 = scmp.ne.s32.totalorder %s96, %s97
      %p109 = scmp.eq.s32.totalorder %s24, 1
      %p110 = por %p108, %p109
      %p112 = scmp.ne.s32.totalorder %s97, %s111
      %p113 = scmp.eq.s32.totalorder %s24, 0
      %p114 = por %p112, %p113
      %s116 = sadd.s32 %s115, 1
      %p119 = scmp.eq.s32.totalorder %s18, 1
      %p120 = scmp.ne.s32.totalorder %s115, %s117
      %p121 = scmp.eq.s32.totalorder %s18, 0
      %p122 = por %p120, %p121
      %p123 = scmp.ne.s32.totalorder %s115, %s117
      %p124 = scmp.eq.s32.totalorder %s23, 1
      %p125 = por %p123, %p124
      %p126 = scmp.ne.s32.totalorder %s117, %s118
      %p127 = scmp.eq.s32.totalorder %s23, 0
      %p128 = por %p126, %p127
      %p129 = scmp.ne.s32.totalorder %s117, %s118
      %p130 = scmp.eq.s32.totalorder %s24, 1
      %p131 = por %p129, %p130
      %p133 = scmp.ne.s32.totalorder %s118, %s132
      %p134 = scmp.eq.s32.totalorder %s24, 0
      %p135 = por %p133, %p134
      %s136 = ssub.s32 %s18, %s25
      %p137 = scmp.eq.s32.totalorder %s136, 0
      %s139 = sadd.s32 %s138, 1
      %s140 = scalar_select %p137, %s138, %s139
      %p143 = pneg %p137
      %p144 = scmp.eq.s32.totalorder %s18, 1
      %p145 = por %p143, %p144
      %p146 = scmp.ne.s32.totalorder %s138, %s141
      %p147 = scmp.eq.s32.totalorder %s18, 0
      %p148 = por %p146, %p147
      %p149 = scmp.ne.s32.totalorder %s138, %s141
      %p150 = scmp.eq.s32.totalorder %s23, 1
      %p151 = por %p149, %p150
      %p152 = scmp.ne.s32.totalorder %s141, %s142
      %p153 = scmp.eq.s32.totalorder %s23, 0
      %p154 = por %p152, %p153
      %p155 = scmp.ne.s32.totalorder %s141, %s142
      %p156 = scmp.eq.s32.totalorder %s24, 1
      %p157 = por %p155, %p156
      %p159 = scmp.ne.s32.totalorder %s142, %s158
      %p160 = scmp.eq.s32.totalorder %s24, 0
      %p161 = por %p159, %p160
      %p162 = scmp.le.s32.totalorder 1, %s18
      %p163 = scmp.lt.s32.totalorder %s18, 3
      %p164 = pnand %p162, %p163
      %p165 = pneg %p164
      // Predicated region
      $region9: #{tpu_custom_call.1} parent=5 // pred_check
        _
      $region10: #{tpu_custom_call.1} parent=5 // pred_check_branch
        %167 = sbr.rel (%p164) target = $region12
      $region11: #{tpu_custom_call.1} parent=5 // pred_region
        %s168 = ssub.s32 %s18, 1
        // Predicated region
        $region13: #{tpu_custom_call.1} parent=11 // pred_check
          %p169 = pneg %p65
        $region14: #{tpu_custom_call.1} parent=11 // pred_check_branch
          %171 = sbr.rel (%p169) target = $region16
        $region15: #{tpu_custom_call.1} parent=11 // pred_region
          %s173 = ssub.s32 2048, 2048
          %174 = vsyncadd [#allocation6], %s173
          %s175 = sshll.u32 [#allocation5], 4
          %s176 = int_to_ptr.vmem [resolvable:$true] %s175
          %181 = dma.hbm_to_vmem [thread:$0]  %s1, 2048, %s176, [#allocation6], 128, 128, 8
        $region16: #{tpu_custom_call.1} parent=11 // pred_fallthru
          _
        // Predicated region
        $region17: #{tpu_custom_call.1} parent=11 // pred_check
          %p182 = pneg %p86
        $region18: #{tpu_custom_call.1} parent=11 // pred_check_branch
          %184 = sbr.rel (%p182) target = $region20
        $region19: #{tpu_custom_call.1} parent=11 // pred_region
          _
        $region20: #{tpu_custom_call.1} parent=11 // pred_fallthru
          _
        // Predicated region
        $region21: #{tpu_custom_call.1} parent=11 // pred_check
          %p185 = pneg %p107
        $region22: #{tpu_custom_call.1} parent=11 // pred_check_branch
          %187 = sbr.rel (%p185) target = $region24
        $region23: #{tpu_custom_call.1} parent=11 // pred_region
          %s189 = ssub.s32 2048, 2048
          %190 = vsyncadd [#allocation6], %s189
          %s191 = sshll.u32 [#allocation7], 4
          %s192 = int_to_ptr.vmem [resolvable:$true] %s191
          %197 = dma.hbm_to_vmem [thread:$0]  %s3, 2048, %s192, [#allocation6], 128, 128, 8
        $region24: #{tpu_custom_call.1} parent=11 // pred_fallthru
          _
        // Predicated region
        $region25: #{tpu_custom_call.1} parent=11 // pred_check
          %p198 = pneg %p128
        $region26: #{tpu_custom_call.1} parent=11 // pred_check_branch
          %200 = sbr.rel (%p198) target = $region28
        $region27: #{tpu_custom_call.1} parent=11 // pred_region
          _
        $region28: #{tpu_custom_call.1} parent=11 // pred_fallthru
          _
      $region12: #{tpu_custom_call.1} parent=5 // pred_fallthru
        _
      %p201 = scmp.lt.s32.totalorder %s18, 2
      // Predicated region
      $region29: #{tpu_custom_call.1} parent=5 // pred_check
        %p202 = pneg %p201
      $region30: #{tpu_custom_call.1} parent=5 // pred_check_branch
        %204 = sbr.rel (%p202) target = $region32
      $region31: #{tpu_custom_call.1} parent=5 // pred_region
        // Predicated region
        $region33: #{tpu_custom_call.1} parent=31 // pred_check
          %p205 = pneg %p38
        $region34: #{tpu_custom_call.1} parent=31 // pred_check_branch
          %207 = sbr.rel (%p205) target = $region36
        $region35: #{tpu_custom_call.1} parent=31 // pred_region
          %s208 = sand.u32 %s28, 1
          %s209 = scalar_lea.sflag [#allocation3], %s208
          %s210 = sand.u32 %s28, 1
          %s211 = smul.addr %s210, 128
          %s212 = scalar_lea.vmem [#allocation2], %s211
          %s213 = smul.u32 16, %s18
          %s215 = ssub.s32 2048, 2048
          %216 = vsyncadd %s209, %s215
          %s217 = smul.addr %s213, 128
          %s218 = scalar_lea.hbm %s0, %s217
          %s219 = sshll.u32 %s212, 4
          %s220 = int_to_ptr.vmem [resolvable:$true] %s219
          %225 = dma.hbm_to_vmem [thread:$0]  %s218, 2048, %s220, %s209, 128, 128, 8
        $region36: #{tpu_custom_call.1} parent=31 // pred_fallthru
          _
      $region32: #{tpu_custom_call.1} parent=5 // pred_fallthru
        _
      %p226 = scmp.le.s32.totalorder 1, %s18
      %p227 = scmp.lt.s32.totalorder %s18, 3
      %p228 = pnand %p226, %p227
      %p229 = pneg %p228
      // Predicated region
      $region37: #{tpu_custom_call.1} parent=5 // pred_check
        _
      $region38: #{tpu_custom_call.1} parent=5 // pred_check_branch
        %231 = sbr.rel (%p228) target = $region40
      $region39: #{tpu_custom_call.1} parent=5 // pred_region
        %s232 = ssub.s32 %s18, 1
        %s233 = sand.u32 %s31, 1
        %s234 = scalar_lea.sflag [#allocation3], %s233
        %s235 = sand.u32 %s31, 1
        %s236 = smul.addr %s235, 128
        %s237 = scalar_lea.vmem [#allocation2], %s236
        // Predicated region
        $region41: #{tpu_custom_call.1} parent=39 // pred_check
          %p238 = pneg %p44
        $region42: #{tpu_custom_call.1} parent=39 // pred_check_branch
          %240 = sbr.rel (%p238) target = $region44
        $region43: #{tpu_custom_call.1} parent=39 // pred_region
          %241 = dma.done %s234, 2048
        $region44: #{tpu_custom_call.1} parent=39 // pred_fallthru
          _
        // Predicated region
        $region45: #{tpu_custom_call.1} parent=39 // pred_check
          %p242 = pneg %p65
        $region46: #{tpu_custom_call.1} parent=39 // pred_check_branch
          %244 = sbr.rel (%p242) target = $region48
        $region47: #{tpu_custom_call.1} parent=39 // pred_region
          %245 = dma.done [#allocation6], 2048
        $region48: #{tpu_custom_call.1} parent=39 // pred_fallthru
          _
        // Predicated region
        $region49: #{tpu_custom_call.1} parent=39 // pred_check
          %p246 = pneg %p107
        $region50: #{tpu_custom_call.1} parent=39 // pred_check_branch
          %248 = sbr.rel (%p246) target = $region52
        $region51: #{tpu_custom_call.1} parent=39 // pred_region
          %249 = dma.done [#allocation6], 2048
        $region52: #{tpu_custom_call.1} parent=39 // pred_fallthru
          _
        %s250 = sand.u32 %s31, 1
        %s251 = scalar_lea.sflag [#allocation3], %s250
        %s252 = sand.u32 %s31, 1
        %s253 = smul.addr %s252, 128
        %s254 = scalar_lea.vmem [#allocation2], %s253
        %p255 = pneg %p44
        %p256 = pneg %p41
        %p257 = pneg %p65
        %p258 = pneg %p62
        %p259 = pneg %p86
        %p260 = pneg %p83
        %p261 = pneg %p107
        %p262 = pneg %p104
        %p263 = pneg %p128
        %p264 = pneg %p125
        %p265 = pneg %p154
        %p266 = pneg %p151
        %s267 = sand.u32 %s141, 1
        %s268 = scalar_lea.sflag [#allocation4], %s267
        %s269 = sand.u32 %s141, 1
        %s270 = smul.addr %s269, 128
        %s271 = scalar_lea.vmem [#allocation8], %s270
        %s272 = smul.u32 16, %s23
        %s273 = smul.u32 16, %s23
        %v274 = vld [vmem:[%s237] sm:$0xff]
        %v275 = vld [vmem:[%s237 + $0x8] sm:$0xff]
        %v276 = vld [vmem:[%s237 + $0x10] sm:$0xff]
        %v277 = vld [vmem:[%s237 + $0x18] sm:$0xff]
        %v278 = vld [vmem:[%s237 + $0x20] sm:$0xff]
        %v279 = vld [vmem:[%s237 + $0x28] sm:$0xff]
        %v280 = vld [vmem:[%s237 + $0x30] sm:$0xff]
        %v281 = vld [vmem:[%s237 + $0x38] sm:$0xff]
        %v282 = vld [vmem:[%s237 + $0x40] sm:$0xff]
        %v283 = vld [vmem:[%s237 + $0x48] sm:$0xff]
        %v284 = vld [vmem:[%s237 + $0x50] sm:$0xff]
        %v285 = vld [vmem:[%s237 + $0x58] sm:$0xff]
        %v286 = vld [vmem:[%s237 + $0x60] sm:$0xff]
        %v287 = vld [vmem:[%s237 + $0x68] sm:$0xff]
        %v288 = vld [vmem:[%s237 + $0x70] sm:$0xff]
        %v289 = vld [vmem:[%s237 + $0x78] sm:$0xff]
        %v290 = vld [vmem:[#allocation5] sm:$0xff]
        %v291 = vld [vmem:[#allocation5 + $0x8] sm:$0xff]
        %v292 = vld [vmem:[#allocation5 + $0x10] sm:$0xff]
        %v293 = vld [vmem:[#allocation5 + $0x18] sm:$0xff]
        %v294 = vld [vmem:[#allocation5 + $0x20] sm:$0xff]
        %v295 = vld [vmem:[#allocation5 + $0x28] sm:$0xff]
        %v296 = vld [vmem:[#allocation5 + $0x30] sm:$0xff]
        %v297 = vld [vmem:[#allocation5 + $0x38] sm:$0xff]
        %v298 = vld [vmem:[#allocation5 + $0x40] sm:$0xff]
        %v299 = vld [vmem:[#allocation5 + $0x48] sm:$0xff]
        %v300 = vld [vmem:[#allocation5 + $0x50] sm:$0xff]
        %v301 = vld [vmem:[#allocation5 + $0x58] sm:$0xff]
        %v302 = vld [vmem:[#allocation5 + $0x60] sm:$0xff]
        %v303 = vld [vmem:[#allocation5 + $0x68] sm:$0xff]
        %v304 = vld [vmem:[#allocation5 + $0x70] sm:$0xff]
        %v305 = vld [vmem:[#allocation5 + $0x78] sm:$0xff]
        %v306 = vld [vmem:[%s2] sm:$0x1]
        %v308 = vlaneseq
        %v309 = vshrl.u32 %v308, 7
        %v310 = vsub.s32 0, %v309
        %v311 = vrot.slane %v306, %v310
        %313 = vmatprep.subr.mxu0 0.0
        %314 = vmatpush1.msra.mxu0 %v290
        %315 = vmatprep.subr.mxu0 0.0
        %316 = vmatpush1.msra.mxu0 %v291
        %317 = vmatprep.subr.mxu0 0.0
        %318 = vmatpush1.msra.mxu0 %v292
        %319 = vmatprep.subr.mxu0 0.0
        %320 = vmatpush1.msra.mxu0 %v293
        %321 = vmatprep.subr.mxu0 0.0
        %322 = vmatpush1.msra.mxu0 %v294
        %323 = vmatprep.subr.mxu0 0.0
        %324 = vmatpush1.msra.mxu0 %v295
        %325 = vmatprep.subr.mxu0 0.0
        %326 = vmatpush1.msra.mxu0 %v296
        %327 = vmatprep.subr.mxu0 0.0
        %328 = vmatpush1.msra.mxu0 %v297
        %329 = vmatprep.subr.mxu0 0.0
        %330 = vmatpush1.msra.mxu0 %v298
        %331 = vmatprep.subr.mxu0 0.0
        %332 = vmatpush1.msra.mxu0 %v299
        %333 = vmatprep.subr.mxu0 0.0
        %334 = vmatpush1.msra.mxu0 %v300
        %335 = vmatprep.subr.mxu0 0.0
        %336 = vmatpush1.msra.mxu0 %v301
        %337 = vmatprep.subr.mxu0 0.0
        %338 = vmatpush1.msra.mxu0 %v302
        %339 = vmatprep.subr.mxu0 0.0
        %340 = vmatpush1.msra.mxu0 %v303
        %341 = vmatprep.subr.mxu0 0.0
        %342 = vmatpush1.msra.mxu0 %v304
        %343 = vmatprep.subr.mxu0 0.0
        %344 = vmatpush1.msra.mxu0 %v305
        %345 = vmatprep.subr.mxu0 0.0
        %346 = vmatpush1.msra.mxu0 0.0
        %347 = vmatprep.subr.mxu0 0.0
        %348 = vmatpush1.msra.mxu0 0.0
        %349 = vmatprep.subr.mxu0 0.0
        %350 = vmatpush1.msra.mxu0 0.0
        %351 = vmatprep.subr.mxu0 0.0
        %352 = vmatpush1.msra.mxu0 0.0
        %353 = vmatprep.subr.mxu0 0.0
        %354 = vmatpush1.msra.mxu0 0.0
        %355 = vmatprep.subr.mxu0 0.0
        %356 = vmatpush1.msra.mxu0 0.0
        %357 = vmatprep.subr.mxu0 0.0
        %358 = vmatpush1.msra.mxu0 0.0
        %359 = vmatprep.subr.mxu0 0.0
        %360 = vmatpush1.msra.mxu0 0.0
        %361 = vmatprep.subr.mxu0 0.0
        %362 = vmatpush1.msra.mxu0 0.0
        %363 = vmatprep.subr.mxu0 0.0
        %364 = vmatpush1.msra.mxu0 0.0
        %365 = vmatprep.subr.mxu0 0.0
        %366 = vmatpush1.msra.mxu0 0.0
        %367 = vmatprep.subr.mxu0 0.0
        %368 = vmatpush1.msra.mxu0 0.0
        %369 = vmatprep.subr.mxu0 0.0
        %370 = vmatpush1.msra.mxu0 0.0
        %371 = vmatprep.subr.mxu0 0.0
        %372 = vmatpush1.msra.mxu0 0.0
        %373 = vmatprep.subr.mxu0 0.0
        %374 = vmatpush1.msra.mxu0 0.0
        %375 = vmatprep.subr.mxu0 0.0
        %376 = vmatpush1.msra.mxu0 0.0
        %377 = vmatprep.mubr.f32.mxu0 0.0
        %378 = vmatmul.mubr.f32.gmra.mrb[0].mxu0 %v274
        %v379 = vpop.f32.mrb[0].mxu0
        %v380 = vadd.f32 %v311, %v379
        %v381 = vpop.f32.mrb[0].mxu0
        %382 = vmatprep.mubr.f32.mxu0 0.0
        %383 = vmatmul.mubr.f32.gmra.mrb[0].mxu0 %v275
        %v384 = vpop.f32.mrb[0].mxu0
        %v385 = vadd.f32 %v311, %v384
        %v386 = vpop.f32.mrb[0].mxu0
        %387 = vmatprep.mubr.f32.mxu0 0.0
        %388 = vmatmul.mubr.f32.gmra.mrb[0].mxu0 %v276
        %v389 = vpop.f32.mrb[0].mxu0
        %v390 = vadd.f32 %v311, %v389
        %v391 = vpop.f32.mrb[0].mxu0
        %392 = vmatprep.mubr.f32.mxu0 0.0
        %393 = vmatmul.mubr.f32.gmra.mrb[0].mxu0 %v277
        %v394 = vpop.f32.mrb[0].mxu0
        %v395 = vadd.f32 %v311, %v394
        %v396 = vpop.f32.mrb[0].mxu0
        %397 = vmatprep.mubr.f32.mxu0 0.0
        %398 = vmatmul.mubr.f32.gmra.mrb[0].mxu0 %v278
        %v399 = vpop.f32.mrb[0].mxu0
        %v400 = vadd.f32 %v311, %v399
        %v401 = vpop.f32.mrb[0].mxu0
        %402 = vmatprep.mubr.f32.mxu0 0.0
        %403 = vmatmul.mubr.f32.gmra.mrb[0].mxu0 %v279
        %v404 = vpop.f32.mrb[0].mxu0
        %v405 = vadd.f32 %v311, %v404
        %v406 = vpop.f32.mrb[0].mxu0
        %407 = vmatprep.mubr.f32.mxu0 0.0
        %408 = vmatmul.mubr.f32.gmra.mrb[0].mxu0 %v280
        %v409 = vpop.f32.mrb[0].mxu0
        %v410 = vadd.f32 %v311, %v409
        %v411 = vpop.f32.mrb[0].mxu0
        %412 = vmatprep.mubr.f32.mxu0 0.0
        %413 = vmatmul.mubr.f32.gmra.mrb[0].mxu0 %v281
        %v414 = vpop.f32.mrb[0].mxu0
        %v415 = vadd.f32 %v311, %v414
        %v416 = vpop.f32.mrb[0].mxu0
        %417 = vmatprep.mubr.f32.mxu0 0.0
        %418 = vmatmul.mubr.f32.gmra.mrb[0].mxu0 %v282
        %v419 = vpop.f32.mrb[0].mxu0
        %v420 = vadd.f32 %v311, %v419
        %v421 = vpop.f32.mrb[0].mxu0
        %422 = vmatprep.mubr.f32.mxu0 0.0
        %423 = vmatmul.mubr.f32.gmra.mrb[0].mxu0 %v283
        %v424 = vpop.f32.mrb[0].mxu0
        %v425 = vadd.f32 %v311, %v424
        %v426 = vpop.f32.mrb[0].mxu0
        %427 = vmatprep.mubr.f32.mxu0 0.0
        %428 = vmatmul.mubr.f32.gmra.mrb[0].mxu0 %v284
        %v429 = vpop.f32.mrb[0].mxu0
        %v430 = vadd.f32 %v311, %v429
        %v431 = vpop.f32.mrb[0].mxu0
        %432 = vmatprep.mubr.f32.mxu0 0.0
        %433 = vmatmul.mubr.f32.gmra.mrb[0].mxu0 %v285
        %v434 = vpop.f32.mrb[0].mxu0
        %v435 = vadd.f32 %v311, %v434
        %v436 = vpop.f32.mrb[0].mxu0
        %437 = vmatprep.mubr.f32.mxu0 0.0
        %438 = vmatmul.mubr.f32.gmra.mrb[0].mxu0 %v286
        %v439 = vpop.f32.mrb[0].mxu0
        %v440 = vadd.f32 %v311, %v439
        %v441 = vpop.f32.mrb[0].mxu0
        %442 = vmatprep.mubr.f32.mxu0 0.0
        %443 = vmatmul.mubr.f32.gmra.mrb[0].mxu0 %v287
        %v444 = vpop.f32.mrb[0].mxu0
        %v445 = vadd.f32 %v311, %v444
        %v446 = vpop.f32.mrb[0].mxu0
        %447 = vmatprep.mubr.f32.mxu0 0.0
        %448 = vmatmul.mubr.f32.gmra.mrb[0].mxu0 %v288
        %v449 = vpop.f32.mrb[0].mxu0
        %v450 = vadd.f32 %v311, %v449
        %v451 = vpop.f32.mrb[0].mxu0
        %452 = vmatprep.mubr.f32.mxu0 0.0
        %453 = vmatmul.mubr.f32.gmra.mrb[0].mxu0 %v289
        %v454 = vpop.f32.mrb[0].mxu0
        %v455 = vadd.f32 %v311, %v454
        %v456 = vpop.f32.mrb[0].mxu0
        %457 = vdwg.mxu0
        %v458 = vmul.f32 %v380, %v380
        %v459 = vmul.f32 %v385, %v385
        %v460 = vmul.f32 %v390, %v390
        %v461 = vmul.f32 %v395, %v395
        %v462 = vmul.f32 %v400, %v400
        %v463 = vmul.f32 %v405, %v405
        %v464 = vmul.f32 %v410, %v410
        %v465 = vmul.f32 %v415, %v415
        %v466 = vmul.f32 %v420, %v420
        %v467 = vmul.f32 %v425, %v425
        %v468 = vmul.f32 %v430, %v430
        %v469 = vmul.f32 %v435, %v435
        %v470 = vmul.f32 %v440, %v440
        %v471 = vmul.f32 %v445, %v445
        %v472 = vmul.f32 %v450, %v450
        %v473 = vmul.f32 %v455, %v455
        %v474 = vmul.f32 %v380, %v458
        %v475 = vmul.f32 %v385, %v459
        %v476 = vmul.f32 %v390, %v460
        %v477 = vmul.f32 %v395, %v461
        %v478 = vmul.f32 %v400, %v462
        %v479 = vmul.f32 %v405, %v463
        %v480 = vmul.f32 %v410, %v464
        %v481 = vmul.f32 %v415, %v465
        %v482 = vmul.f32 %v420, %v466
        %v483 = vmul.f32 %v425, %v467
        %v484 = vmul.f32 %v430, %v468
        %v485 = vmul.f32 %v435, %v469
        %v486 = vmul.f32 %v440, %v470
        %v487 = vmul.f32 %v445, %v471
        %v488 = vmul.f32 %v450, %v472
        %v489 = vmul.f32 %v455, %v473
        %v490 = vmul.f32 %v474, 0.044715
        %v491 = vmul.f32 %v475, 0.044715
        %v492 = vmul.f32 %v476, 0.044715
        %v493 = vmul.f32 %v477, 0.044715
        %v494 = vmul.f32 %v478, 0.044715
        %v495 = vmul.f32 %v479, 0.044715
        %v496 = vmul.f32 %v480, 0.044715
        %v497 = vmul.f32 %v481, 0.044715
        %v498 = vmul.f32 %v482, 0.044715
        %v499 = vmul.f32 %v483, 0.044715
        %v500 = vmul.f32 %v484, 0.044715
        %v501 = vmul.f32 %v485, 0.044715
        %v502 = vmul.f32 %v486, 0.044715
        %v503 = vmul.f32 %v487, 0.044715
        %v504 = vmul.f32 %v488, 0.044715
        %v505 = vmul.f32 %v489, 0.044715
        %v506 = vadd.f32 %v380, %v490
        %v507 = vadd.f32 %v385, %v491
        %v508 = vadd.f32 %v390, %v492
        %v509 = vadd.f32 %v395, %v493
        %v510 = vadd.f32 %v400, %v494
        %v511 = vadd.f32 %v405, %v495
        %v512 = vadd.f32 %v410, %v496
        %v513 = vadd.f32 %v415, %v497
        %v514 = vadd.f32 %v420, %v498
        %v515 = vadd.f32 %v425, %v499
        %v516 = vadd.f32 %v430, %v500
        %v517 = vadd.f32 %v435, %v501
        %v518 = vadd.f32 %v440, %v502
        %v519 = vadd.f32 %v445, %v503
        %v520 = vadd.f32 %v450, %v504
        %v521 = vadd.f32 %v455, %v505
        %v522 = vmul.f32 %v506, 0.7978846
        %v523 = vmul.f32 %v507, 0.7978846
        %v524 = vmul.f32 %v508, 0.7978846
        %v525 = vmul.f32 %v509, 0.7978846
        %v526 = vmul.f32 %v510, 0.7978846
        %v527 = vmul.f32 %v511, 0.7978846
        %v528 = vmul.f32 %v512, 0.7978846
        %v529 = vmul.f32 %v513, 0.7978846
        %v530 = vmul.f32 %v514, 0.7978846
        %v531 = vmul.f32 %v515, 0.7978846
        %v532 = vmul.f32 %v516, 0.7978846
        %v533 = vmul.f32 %v517, 0.7978846
        %v534 = vmul.f32 %v518, 0.7978846
        %v535 = vmul.f32 %v519, 0.7978846
        %v536 = vmul.f32 %v520, 0.7978846
        %v537 = vmul.f32 %v521, 0.7978846
        %v538 = vtanh.pop %v522
        %v539 = vtanh.pop %v523
        %v540 = vtanh.pop %v524
        %v541 = vtanh.pop %v525
        %v542 = vtanh.pop %v526
        %v543 = vtanh.pop %v527
        %v544 = vtanh.pop %v528
        %v545 = vtanh.pop %v529
        %v546 = vtanh.pop %v530
        %v547 = vtanh.pop %v531
        %v548 = vtanh.pop %v532
        %v549 = vtanh.pop %v533
        %v550 = vtanh.pop %v534
        %v551 = vtanh.pop %v535
        %v552 = vtanh.pop %v536
        %v553 = vtanh.pop %v537
        %v554 = vadd.f32 %v538, 1.0
        %v555 = vadd.f32 %v539, 1.0
        %v556 = vadd.f32 %v540, 1.0
        %v557 = vadd.f32 %v541, 1.0
        %v558 = vadd.f32 %v542, 1.0
        %v559 = vadd.f32 %v543, 1.0
        %v560 = vadd.f32 %v544, 1.0
        %v561 = vadd.f32 %v545, 1.0
        %v562 = vadd.f32 %v546, 1.0
        %v563 = vadd.f32 %v547, 1.0
        %v564 = vadd.f32 %v548, 1.0
        %v565 = vadd.f32 %v549, 1.0
        %v566 = vadd.f32 %v550, 1.0
        %v567 = vadd.f32 %v551, 1.0
        %v568 = vadd.f32 %v552, 1.0
        %v569 = vadd.f32 %v553, 1.0
        %v570 = vmul.f32 %v554, 0.5
        %v571 = vmul.f32 %v555, 0.5
        %v572 = vmul.f32 %v556, 0.5
        %v573 = vmul.f32 %v557, 0.5
        %v574 = vmul.f32 %v558, 0.5
        %v575 = vmul.f32 %v559, 0.5
        %v576 = vmul.f32 %v560, 0.5
        %v577 = vmul.f32 %v561, 0.5
        %v578 = vmul.f32 %v562, 0.5
        %v579 = vmul.f32 %v563, 0.5
        %v580 = vmul.f32 %v564, 0.5
        %v581 = vmul.f32 %v565, 0.5
        %v582 = vmul.f32 %v566, 0.5
        %v583 = vmul.f32 %v567, 0.5
        %v584 = vmul.f32 %v568, 0.5
        %v585 = vmul.f32 %v569, 0.5
        %v586 = vmul.f32 %v380, %v570
        %v587 = vmul.f32 %v385, %v571
        %v588 = vmul.f32 %v390, %v572
        %v589 = vmul.f32 %v395, %v573
        %v590 = vmul.f32 %v400, %v574
        %v591 = vmul.f32 %v405, %v575
        %v592 = vmul.f32 %v410, %v576
        %v593 = vmul.f32 %v415, %v577
        %v594 = vmul.f32 %v420, %v578
        %v595 = vmul.f32 %v425, %v579
        %v596 = vmul.f32 %v430, %v580
        %v597 = vmul.f32 %v435, %v581
        %v598 = vmul.f32 %v440, %v582
        %v599 = vmul.f32 %v445, %v583
        %v600 = vmul.f32 %v450, %v584
        %v601 = vmul.f32 %v455, %v585
        %v602 = vld [vmem:[#allocation7] sm:$0xff]
        %v603 = vld [vmem:[#allocation7 + $0x8] sm:$0xff]
        %v604 = vld [vmem:[#allocation7 + $0x10] sm:$0xff]
        %v605 = vld [vmem:[#allocation7 + $0x18] sm:$0xff]
        %v606 = vld [vmem:[#allocation7 + $0x20] sm:$0xff]
        %v607 = vld [vmem:[#allocation7 + $0x28] sm:$0xff]
        %v608 = vld [vmem:[#allocation7 + $0x30] sm:$0xff]
        %v609 = vld [vmem:[#allocation7 + $0x38] sm:$0xff]
        %v610 = vld [vmem:[#allocation7 + $0x40] sm:$0xff]
        %v611 = vld [vmem:[#allocation7 + $0x48] sm:$0xff]
        %v612 = vld [vmem:[#allocation7 + $0x50] sm:$0xff]
        %v613 = vld [vmem:[#allocation7 + $0x58] sm:$0xff]
        %v614 = vld [vmem:[#allocation7 + $0x60] sm:$0xff]
        %v615 = vld [vmem:[#allocation7 + $0x68] sm:$0xff]
        %v616 = vld [vmem:[#allocation7 + $0x70] sm:$0xff]
        %v617 = vld [vmem:[#allocation7 + $0x78] sm:$0xff]
        %v618 = vld [vmem:[%s4] sm:$0x1]
        %v620 = vlaneseq
        %v621 = vshrl.u32 %v620, 7
        %v622 = vsub.s32 0, %v621
        %v623 = vrot.slane %v618, %v622
        %625 = vmatprep.subr.mxu0 0.0
        %626 = vmatpush1.msra.mxu0 %v602
        %627 = vmatprep.subr.mxu0 0.0
        %628 = vmatpush1.msra.mxu0 %v603
        %629 = vmatprep.subr.mxu0 0.0
        %630 = vmatpush1.msra.mxu0 %v604
        %631 = vmatprep.subr.mxu0 0.0
        %632 = vmatpush1.msra.mxu0 %v605
        %633 = vmatprep.subr.mxu0 0.0
        %634 = vmatpush1.msra.mxu0 %v606
        %635 = vmatprep.subr.mxu0 0.0
        %636 = vmatpush1.msra.mxu0 %v607
        %637 = vmatprep.subr.mxu0 0.0
        %638 = vmatpush1.msra.mxu0 %v608
        %639 = vmatprep.subr.mxu0 0.0
        %640 = vmatpush1.msra.mxu0 %v609
        %641 = vmatprep.subr.mxu0 0.0
        %642 = vmatpush1.msra.mxu0 %v610
        %643 = vmatprep.subr.mxu0 0.0
        %644 = vmatpush1.msra.mxu0 %v611
        %645 = vmatprep.subr.mxu0 0.0
        %646 = vmatpush1.msra.mxu0 %v612
        %647 = vmatprep.subr.mxu0 0.0
        %648 = vmatpush1.msra.mxu0 %v613
        %649 = vmatprep.subr.mxu0 0.0
        %650 = vmatpush1.msra.mxu0 %v614
        %651 = vmatprep.subr.mxu0 0.0
        %652 = vmatpush1.msra.mxu0 %v615
        %653 = vmatprep.subr.mxu0 0.0
        %654 = vmatpush1.msra.mxu0 %v616
        %655 = vmatprep.subr.mxu0 0.0
        %656 = vmatpush1.msra.mxu0 %v617
        %657 = vmatprep.subr.mxu0 0.0
        %658 = vmatpush1.msra.mxu0 0.0
        %659 = vmatprep.subr.mxu0 0.0
        %660 = vmatpush1.msra.mxu0 0.0
        %661 = vmatprep.subr.mxu0 0.0
        %662 = vmatpush1.msra.mxu0 0.0
        %663 = vmatprep.subr.mxu0 0.0
        %664 = vmatpush1.msra.mxu0 0.0
        %665 = vmatprep.subr.mxu0 0.0
        %666 = vmatpush1.msra.mxu0 0.0
        %667 = vmatprep.subr.mxu0 0.0
        %668 = vmatpush1.msra.mxu0 0.0
        %669 = vmatprep.subr.mxu0 0.0
        %670 = vmatpush1.msra.mxu0 0.0
        %671 = vmatprep.subr.mxu0 0.0
        %672 = vmatpush1.msra.mxu0 0.0
        %673 = vmatprep.subr.mxu0 0.0
        %674 = vmatpush1.msra.mxu0 0.0
        %675 = vmatprep.subr.mxu0 0.0
        %676 = vmatpush1.msra.mxu0 0.0
        %677 = vmatprep.subr.mxu0 0.0
        %678 = vmatpush1.msra.mxu0 0.0
        %679 = vmatprep.subr.mxu0 0.0
        %680 = vmatpush1.msra.mxu0 0.0
        %681 = vmatprep.subr.mxu0 0.0
        %682 = vmatpush1.msra.mxu0 0.0
        %683 = vmatprep.subr.mxu0 0.0
        %684 = vmatpush1.msra.mxu0 0.0
        %685 = vmatprep.subr.mxu0 0.0
        %686 = vmatpush1.msra.mxu0 0.0
        %687 = vmatprep.subr.mxu0 0.0
        %688 = vmatpush1.msra.mxu0 0.0
        %689 = vmatprep.mubr.f32.mxu0 0.0
        %690 = vmatmul.mubr.f32.gmra.mrb[0].mxu0 %v586
        %v691 = vpop.f32.mrb[0].mxu0
        %v692 = vadd.f32 %v623, %v691
        %v693 = vpop.f32.mrb[0].mxu0
        %694 = vmatprep.mubr.f32.mxu0 0.0
        %695 = vmatmul.mubr.f32.gmra.mrb[0].mxu0 %v587
        %v696 = vpop.f32.mrb[0].mxu0
        %v697 = vadd.f32 %v623, %v696
        %v698 = vpop.f32.mrb[0].mxu0
        %699 = vmatprep.mubr.f32.mxu0 0.0
        %700 = vmatmul.mubr.f32.gmra.mrb[0].mxu0 %v588
        %v701 = vpop.f32.mrb[0].mxu0
        %v702 = vadd.f32 %v623, %v701
        %v703 = vpop.f32.mrb[0].mxu0
        %704 = vmatprep.mubr.f32.mxu0 0.0
        %705 = vmatmul.mubr.f32.gmra.mrb[0].mxu0 %v589
        %v706 = vpop.f32.mrb[0].mxu0
        %v707 = vadd.f32 %v623, %v706
        %v708 = vpop.f32.mrb[0].mxu0
        %709 = vmatprep.mubr.f32.mxu0 0.0
        %710 = vmatmul.mubr.f32.gmra.mrb[0].mxu0 %v590
        %v711 = vpop.f32.mrb[0].mxu0
        %v712 = vadd.f32 %v623, %v711
        %v713 = vpop.f32.mrb[0].mxu0
        %714 = vmatprep.mubr.f32.mxu0 0.0
        %715 = vmatmul.mubr.f32.gmra.mrb[0].mxu0 %v591
        %v716 = vpop.f32.mrb[0].mxu0
        %v717 = vadd.f32 %v623, %v716
        %v718 = vpop.f32.mrb[0].mxu0
        %719 = vmatprep.mubr.f32.mxu0 0.0
        %720 = vmatmul.mubr.f32.gmra.mrb[0].mxu0 %v592
        %v721 = vpop.f32.mrb[0].mxu0
        %v722 = vadd.f32 %v623, %v721
        %v723 = vpop.f32.mrb[0].mxu0
        %724 = vmatprep.mubr.f32.mxu0 0.0
        %725 = vmatmul.mubr.f32.gmra.mrb[0].mxu0 %v593
        %v726 = vpop.f32.mrb[0].mxu0
        %v727 = vadd.f32 %v623, %v726
        %v728 = vpop.f32.mrb[0].mxu0
        %729 = vmatprep.mubr.f32.mxu0 0.0
        %730 = vmatmul.mubr.f32.gmra.mrb[0].mxu0 %v594
        %v731 = vpop.f32.mrb[0].mxu0
        %v732 = vadd.f32 %v623, %v731
        %v733 = vpop.f32.mrb[0].mxu0
        %734 = vmatprep.mubr.f32.mxu0 0.0
        %735 = vmatmul.mubr.f32.gmra.mrb[0].mxu0 %v595
        %v736 = vpop.f32.mrb[0].mxu0
        %v737 = vadd.f32 %v623, %v736
        %v738 = vpop.f32.mrb[0].mxu0
        %739 = vmatprep.mubr.f32.mxu0 0.0
        %740 = vmatmul.mubr.f32.gmra.mrb[0].mxu0 %v596
        %v741 = vpop.f32.mrb[0].mxu0
        %v742 = vadd.f32 %v623, %v741
        %v743 = vpop.f32.mrb[0].mxu0
        %744 = vmatprep.mubr.f32.mxu0 0.0
        %745 = vmatmul.mubr.f32.gmra.mrb[0].mxu0 %v597
        %v746 = vpop.f32.mrb[0].mxu0
        %v747 = vadd.f32 %v623, %v746
        %v748 = vpop.f32.mrb[0].mxu0
        %749 = vmatprep.mubr.f32.mxu0 0.0
        %750 = vmatmul.mubr.f32.gmra.mrb[0].mxu0 %v598
        %v751 = vpop.f32.mrb[0].mxu0
        %v752 = vadd.f32 %v623, %v751
        %v753 = vpop.f32.mrb[0].mxu0
        %754 = vmatprep.mubr.f32.mxu0 0.0
        %755 = vmatmul.mubr.f32.gmra.mrb[0].mxu0 %v599
        %v756 = vpop.f32.mrb[0].mxu0
        %v757 = vadd.f32 %v623, %v756
        %v758 = vpop.f32.mrb[0].mxu0
        %759 = vmatprep.mubr.f32.mxu0 0.0
        %760 = vmatmul.mubr.f32.gmra.mrb[0].mxu0 %v600
        %v761 = vpop.f32.mrb[0].mxu0
        %v762 = vadd.f32 %v623, %v761
        %v763 = vpop.f32.mrb[0].mxu0
        %764 = vmatprep.mubr.f32.mxu0 0.0
        %765 = vmatmul.mubr.f32.gmra.mrb[0].mxu0 %v601
        %v766 = vpop.f32.mrb[0].mxu0
        %v767 = vadd.f32 %v623, %v766
        %v768 = vpop.f32.mrb[0].mxu0
        %769 = vdwg.mxu0
        %v770 = vadd.f32 %v692, %v274
        %v771 = vadd.f32 %v697, %v275
        %v772 = vadd.f32 %v702, %v276
        %v773 = vadd.f32 %v707, %v277
        %v774 = vadd.f32 %v712, %v278
        %v775 = vadd.f32 %v717, %v279
        %v776 = vadd.f32 %v722, %v280
        %v777 = vadd.f32 %v727, %v281
        %v778 = vadd.f32 %v732, %v282
        %v779 = vadd.f32 %v737, %v283
        %v780 = vadd.f32 %v742, %v284
        %v781 = vadd.f32 %v747, %v285
        %v782 = vadd.f32 %v752, %v286
        %v783 = vadd.f32 %v757, %v287
        %v784 = vadd.f32 %v762, %v288
        %v785 = vadd.f32 %v767, %v289
        %786 = vst [vmem:[%s271] sm:$0xff] %v770
        %787 = vst [vmem:[%s271 + $0x8] sm:$0xff] %v771
        %788 = vst [vmem:[%s271 + $0x10] sm:$0xff] %v772
        %789 = vst [vmem:[%s271 + $0x18] sm:$0xff] %v773
        %790 = vst [vmem:[%s271 + $0x20] sm:$0xff] %v774
        %791 = vst [vmem:[%s271 + $0x28] sm:$0xff] %v775
        %792 = vst [vmem:[%s271 + $0x30] sm:$0xff] %v776
        %793 = vst [vmem:[%s271 + $0x38] sm:$0xff] %v777
        %794 = vst [vmem:[%s271 + $0x40] sm:$0xff] %v778
        %795 = vst [vmem:[%s271 + $0x48] sm:$0xff] %v779
        %796 = vst [vmem:[%s271 + $0x50] sm:$0xff] %v780
        %797 = vst [vmem:[%s271 + $0x58] sm:$0xff] %v781
        %798 = vst [vmem:[%s271 + $0x60] sm:$0xff] %v782
        %799 = vst [vmem:[%s271 + $0x68] sm:$0xff] %v783
        %800 = vst [vmem:[%s271 + $0x70] sm:$0xff] %v784
        %801 = vst [vmem:[%s271 + $0x78] sm:$0xff] %v785
        %s802 = sand.u32 %s141, 1
        %s803 = scalar_lea.sflag [#allocation4], %s802
        %s804 = sand.u32 %s141, 1
        %s805 = smul.addr %s804, 128
        %s806 = scalar_lea.vmem [#allocation8], %s805
        // Predicated region
        $region53: #{tpu_custom_call.1} parent=39 // pred_check
          %p807 = pneg %p151
        $region54: #{tpu_custom_call.1} parent=39 // pred_check_branch
          %809 = sbr.rel (%p807) target = $region56
        $region55: #{tpu_custom_call.1} parent=39 // pred_region
          %s810 = smul.u32 16, %s23
          %s812 = ssub.s32 2048, 2048
          %813 = vsyncadd %s803, %s812
          %s814 = smul.addr %s810, 128
          %s815 = scalar_lea.hbm %s5, %s814
          %s816 = sshll.u32 %s806, 4
          %s817 = int_to_ptr.vmem [resolvable:$true] %s816
          %822 = dma.vmem_to_hbm [thread:$0]  %s817, 2048, %s815, %s803, 128, 128, 8
        $region56: #{tpu_custom_call.1} parent=39 // pred_fallthru
          _
      $region40: #{tpu_custom_call.1} parent=5 // pred_fallthru
        _
      %p823 = scmp.le.s32.totalorder 2, %s18
      // Predicated region
      $region57: #{tpu_custom_call.1} parent=5 // pred_check
        %p824 = pneg %p823
      $region58: #{tpu_custom_call.1} parent=5 // pred_check_branch
        %826 = sbr.rel (%p824) target = $region60
      $region59: #{tpu_custom_call.1} parent=5 // pred_region
        %s827 = ssub.s32 %s18, 2
        // Predicated region
        $region61: #{tpu_custom_call.1} parent=59 // pred_check
          %p828 = pneg %p157
        $region62: #{tpu_custom_call.1} parent=59 // pred_check_branch
          %830 = sbr.rel (%p828) target = $region64
        $region63: #{tpu_custom_call.1} parent=59 // pred_region
          %s831 = sand.u32 %s142, 1
          %s832 = scalar_lea.sflag [#allocation4], %s831
          %s833 = sand.u32 %s142, 1
          %s834 = smul.addr %s833, 128
          %s835 = scalar_lea.vmem [#allocation8], %s834
          %836 = dma.done %s832, 2048
        $region64: #{tpu_custom_call.1} parent=59 // pred_fallthru
          _
      $region60: #{tpu_custom_call.1} parent=5 // pred_fallthru
        _
    $region6: #{tpu_custom_call.1} parent=1 // loop_footer
      %s22 = sadd.s32 1, %s18
    $region7: #{tpu_custom_call.1} parent=1 // loop_footer_branch
      %17 = sbr.rel target = $region3
    $region8: #{tpu_custom_call.1} parent=1 // loop_exit
      _
    %837 = vsyncpa [#allocation3], 1
    %s838 = scalar_lea.sflag [#allocation3], 1
    %839 = vsyncpa %s838, 1
    %840 = vsyncpa [#allocation6], 1
    %841 = vsyncpa [#allocation4], 1
    %s842 = scalar_lea.sflag [#allocation4], 1
    %843 = vsyncpa %s842, 1

</llo_original>
